<compile_context>
chip_gen: v7x
topology: tpu7x:2x2x1
jax: 0.10.0
libtpu: 0.0.40
codegen_flags: <defaults>
</compile_context>

<pallas_src>
import functools

import numpy as np
import jax
import jax.numpy as jnp
from jax.experimental import pallas as pl
from jax.experimental.pallas import tpu as pltpu

# ---------------------------------------------------------------------------
# Configuration (cfg.input_dim / cfg.output_dim / cfg.network_capacity)
# ---------------------------------------------------------------------------
INPUT_DIM = 4          # cfg.input_dim        (low-res image channels)
OUTPUT_DIM = 4         # cfg.output_dim       (high-res image channels)
CAPACITY = 32          # cfg.network_capacity (hidden feature channels)
SCALE = 2              # upsampling factor r  (sub-pixel conv)
COUT2 = OUTPUT_DIM * SCALE * SCALE
CIN_PAD = 8            # input channels zero-padded to a full sublane tile


def _round_up(x, m):
    return ((x + m - 1) // m) * m


# ---------------------------------------------------------------------------
# Fused kernel: conv1(3x3) + ReLU + conv2(3x3), one batch element per grid step.
# The image lives flattened (row-major, zero-framed) on the lane axis; 3x3 taps
# become static lane-offset slices of the flat frame.
# ---------------------------------------------------------------------------
def _fused_sr_kernel(x_ref, mask_ref, w1_ref, b1_ref, w2_ref, b2_ref, o_ref,
                     *, Wp, q1, G, L1P, L2P):
    x = x_ref[0]               # (CIN_PAD, FSIZE_PAD): channels on sublanes, pixels on lanes

    offs = [(kh - 1) * Wp + (kw - 1) for kh in range(3) for kw in range(3)]

    # ---- conv1 as one im2col matmul on the MXU: (cap, 9*8) @ (9*8, L1P) ----
    x_cols = jnp.concatenate([x[:, q1 + d: q1 + d + L1P] for d in offs], axis=0)
    y1 = jnp.dot(w1_ref[...], x_cols, preferred_element_type=jnp.float32)
    # bias + ReLU, then zero everything outside the real image so the frame border
    # is exactly the zero padding seen by the second conv (no VMEM scratch needed).
    h1 = jnp.maximum(y1 + b1_ref[...], 0.0) * mask_ref[...]          # (cap, L1P)

    # ---- conv2 as one im2col matmul: (cout2, 9*cap) @ (9*cap, L2P) ----
    h_cols = jnp.concatenate([h1[:, G + d: G + d + L2P] for d in offs], axis=0)
    y2 = jnp.dot(w2_ref[...], h_cols, preferred_element_type=jnp.float32)
    o_ref[0] = y2 + b2_ref[...]                                      # (cout2, L2P)


@jax.jit
def super_resolution_forward(x_nchw, w1_hwio, b1, w2_hwio, b2):
    """x_nchw: (B, INPUT_DIM, H, W) float32 -> (B, OUTPUT_DIM, H*r, W*r)."""
    B, C, H, W = x_nchw.shape
    assert C == INPUT_DIM

    # Frame / range geometry (all static Python ints under jit).
    Wp = W + 2                          # frame width  (1 zero column each side)
    G = Wp + 1                          # max |flat offset| of a 3x3 tap
    q1 = 2 * Wp - 1                     # frame-flat index where the conv1 range starts
    L2 = (H + 2) * Wp                   # real conv2/output range: frame rows 3 .. H+4
    L2P = _round_up(L2, 128)            # lane-dense output range (unmasked stores)
    L1P = L2P + 2 * G                   # conv1/hidden range: conv2 range + G halo each side
    FSIZE = (H + 8) * Wp                # 4 zero rows top/bottom give the flat-slice halo
    FSIZE_PAD = _round_up(max(FSIZE, 3 * Wp + L1P), 128)   # lane-dense input loads

    # Single fused pad: channels -> 8 (full sublane tile), 4 halo rows, 1 halo column.
    # No NCHW->NHWC transpose: channels stay leading; padded pixels flatten onto lanes.
    x = jnp.pad(x_nchw.astype(jnp.float32),
                ((0, 0), (0, CIN_PAD - INPUT_DIM), (4, 4), (1, 1)))
    x = x.reshape(B, CIN_PAD, FSIZE)
    x = jnp.pad(x, ((0, 0), (0, 0), (0, FSIZE_PAD - FSIZE)))         # lane-align frame

    # im2col weight layout: (cout, kh, kw, cin_padded) flattened on the contraction axis.
    w1f = jnp.transpose(w1_hwio, (3, 0, 1, 2))                       # (cap, 3, 3, cin)
    w1f = jnp.pad(w1f, ((0, 0), (0, 0), (0, 0), (0, CIN_PAD - INPUT_DIM)))
    w1f = w1f.reshape(CAPACITY, 9 * CIN_PAD)
    w2f = jnp.transpose(w2_hwio, (3, 0, 1, 2)).reshape(COUT2, 9 * CAPACITY)

    # Interior mask over the conv1 range: 1 on real image pixels, 0 on the zero frame
    # (and on the lane-padding tail beyond the real frame).
    f = np.arange(L1P) + q1
    row, col = f // Wp, f % Wp
    mask_np = ((row >= 4) & (row <= H + 3) & (col >= 1) & (col <= W))
    mask = jnp.asarray(mask_np.astype(np.float32).reshape(1, L1P))

    kernel = functools.partial(_fused_sr_kernel, Wp=Wp, q1=q1, G=G, L1P=L1P, L2P=L2P)

    out = pl.pallas_call(
        kernel,
        out_shape=jax.ShapeDtypeStruct((B, COUT2, L2P), jnp.float32),
        grid_spec=pltpu.PrefetchScalarGridSpec(
            num_scalar_prefetch=0,
            grid=(B,),
            in_specs=[
                pl.BlockSpec((1, CIN_PAD, FSIZE_PAD), lambda b: (b, 0, 0)),
                pl.BlockSpec((1, L1P), lambda b: (0, 0)),
                pl.BlockSpec((CAPACITY, 9 * CIN_PAD), lambda b: (0, 0)),
                pl.BlockSpec((CAPACITY, 1), lambda b: (0, 0)),
                pl.BlockSpec((COUT2, 9 * CAPACITY), lambda b: (0, 0)),
                pl.BlockSpec((COUT2, 1), lambda b: (0, 0)),
            ],
            out_specs=pl.BlockSpec((1, COUT2, L2P), lambda b: (b, 0, 0)),
        ),
        compiler_params=pltpu.CompilerParams(
            dimension_semantics=("parallel",)),
    )(x, mask, w1f, b1.reshape(CAPACITY, 1), w2f, b2.reshape(COUT2, 1))

    # out covers frame rows 3..H+4 (plus lane-padding tail); crop the image interior,
    # then PixelShuffle (NCHW, torch semantics).
    y = out[:, :, :L2].reshape(B, COUT2, H + 2, Wp)[:, :, 1:1 + H, 1:1 + W]
    r = SCALE
    y = y.reshape(B, OUTPUT_DIM, r, r, H, W)
    y = jnp.transpose(y, (0, 1, 4, 2, 5, 3)).reshape(B, OUTPUT_DIM, H * r, W * r)
    return y


# ---------------------------------------------------------------------------
# Pure-JAX reference (lax.conv) for correctness checking
# ---------------------------------------------------------------------------
def _reference_forward(x_nchw, w1, b1, w2, b2):
    dn = ("NCHW", "HWIO", "NCHW")
    y = jax.lax.conv_general_dilated(x_nchw, w1, (1, 1), "SAME",
                                     dimension_numbers=dn)
    y = jnp.maximum(y + b1.reshape(1, -1, 1, 1), 0.0)
    y = jax.lax.conv_general_dilated(y, w2, (1, 1), "SAME",
                                     dimension_numbers=dn)
    y = y + b2.reshape(1, -1, 1, 1)
    # torch.nn.PixelShuffle semantics (NCHW)
    B, Ctot, H, W = y.shape
    r = SCALE
    c = Ctot // (r * r)
    y = y.reshape(B, c, r, r, H, W)
    y = jnp.transpose(y, (0, 1, 4, 2, 5, 3)).reshape(B, c, H * r, W * r)
    return y


if __name__ == "__main__":
    key = jax.random.PRNGKey(0)
    kx, k1, k2, k3, k4 = jax.random.split(key, 5)

    B, H, W = 2, 16, 16
    x = jax.random.normal(kx, (B, INPUT_DIM, H, W), jnp.float32)

    # Deterministic parameter init (HWIO weight layout).
    w1 = 0.1 * jax.random.normal(k1, (3, 3, INPUT_DIM, CAPACITY), jnp.float32)
    b1 = 0.01 * jax.random.normal(k2, (CAPACITY,), jnp.float32)
    w2 = 0.1 * jax.random.normal(k3, (3, 3, CAPACITY, COUT2), jnp.float32)
    b2 = 0.01 * jax.random.normal(k4, (COUT2,), jnp.float32)

    out = super_resolution_forward(x, w1, b1, w2, b2)
    out = jax.block_until_ready(out)

    ref = _reference_forward(x, w1, b1, w2, b2)
    assert out.shape == (B, OUTPUT_DIM, H * SCALE, W * SCALE), out.shape
    err = float(jnp.max(jnp.abs(out - ref)))
    assert err < 1e-3, err

    print("KERNEL_OK")
</pallas_src>

<mosaic_0001>
module attributes {stable_mosaic.version = 11 : i64} {
  func.func @_fused_sr_kernel(%arg0: i32, %arg1: memref<1x8x512xf32, #tpu.memory_space<vmem>>, %arg2: memref<1x422xf32, #tpu.memory_space<vmem>>, %arg3: memref<32x72xf32, #tpu.memory_space<vmem>>, %arg4: memref<32x1xf32, #tpu.memory_space<vmem>>, %arg5: memref<16x288xf32, #tpu.memory_space<vmem>>, %arg6: memref<16x1xf32, #tpu.memory_space<vmem>>, %arg7: memref<1x16x384xf32, #tpu.memory_space<vmem>>) attributes {dimension_semantics = [#tpu.dimension_semantics<parallel>], iteration_bounds = array<i64: 2>, scalar_prefetch = 0 : i64, scratch_operands = 0 : i64, tpu.core_type = #tpu.core_type<tc>, window_params = [{transform_indices = @transform_0, window_bounds = array<i64: 1, 8, 512>}, {pipeline_mode = #tpu.pipeline_mode<synchronous>, transform_indices = @transform_1, window_bounds = array<i64: 1, 422>}, {pipeline_mode = #tpu.pipeline_mode<synchronous>, transform_indices = @transform_2, window_bounds = array<i64: 32, 72>}, {pipeline_mode = #tpu.pipeline_mode<synchronous>, transform_indices = @transform_3, window_bounds = array<i64: 32, 1>}, {pipeline_mode = #tpu.pipeline_mode<synchronous>, transform_indices = @transform_4, window_bounds = array<i64: 16, 288>}, {pipeline_mode = #tpu.pipeline_mode<synchronous>, transform_indices = @transform_5, window_bounds = array<i64: 16, 1>}, {transform_indices = @transform_6, window_bounds = array<i64: 1, 16, 384>}]} {
    %c0 = arith.constant 0 : index
    %c0_0 = arith.constant 0 : index
    %c0_1 = arith.constant 0 : index
    %0 = vector.load %arg1[%c0, %c0_0, %c0_1] : memref<1x8x512xf32, #tpu.memory_space<vmem>>, vector<1x8x512xf32>
    %1 = vector.shape_cast %0 : vector<1x8x512xf32> to vector<8x512xf32>
    %2 = vector.extract_strided_slice %1 {offsets = [0, 16], sizes = [8, 422], strides = [1, 1]} : vector<8x512xf32> to vector<8x422xf32>
    %3 = vector.extract_strided_slice %1 {offsets = [0, 17], sizes = [8, 422], strides = [1, 1]} : vector<8x512xf32> to vector<8x422xf32>
    %4 = vector.extract_strided_slice %1 {offsets = [0, 18], sizes = [8, 422], strides = [1, 1]} : vector<8x512xf32> to vector<8x422xf32>
    %5 = vector.extract_strided_slice %1 {offsets = [0, 34], sizes = [8, 422], strides = [1, 1]} : vector<8x512xf32> to vector<8x422xf32>
    %6 = vector.extract_strided_slice %1 {offsets = [0, 35], sizes = [8, 422], strides = [1, 1]} : vector<8x512xf32> to vector<8x422xf32>
    %7 = vector.extract_strided_slice %1 {offsets = [0, 36], sizes = [8, 422], strides = [1, 1]} : vector<8x512xf32> to vector<8x422xf32>
    %8 = vector.extract_strided_slice %1 {offsets = [0, 52], sizes = [8, 422], strides = [1, 1]} : vector<8x512xf32> to vector<8x422xf32>
    %9 = vector.extract_strided_slice %1 {offsets = [0, 53], sizes = [8, 422], strides = [1, 1]} : vector<8x512xf32> to vector<8x422xf32>
    %10 = vector.extract_strided_slice %1 {offsets = [0, 54], sizes = [8, 422], strides = [1, 1]} : vector<8x512xf32> to vector<8x422xf32>
    %11 = tpu.concatenate %2, %3, %4, %5, %6, %7, %8, %9, %10 in 0 : vector<8x422xf32>, vector<8x422xf32>, vector<8x422xf32>, vector<8x422xf32>, vector<8x422xf32>, vector<8x422xf32>, vector<8x422xf32>, vector<8x422xf32>, vector<8x422xf32> -> vector<72x422xf32>
    %c0_2 = arith.constant 0 : index
    %c0_3 = arith.constant 0 : index
    %12 = vector.load %arg3[%c0_2, %c0_3] : memref<32x72xf32, #tpu.memory_space<vmem>>, vector<32x72xf32>
    %cst = arith.constant dense<0.000000e+00> : vector<32x422xf32>
    %13 = tpu.matmul %12, %11, %cst {dimension_numbers = #tpu.dot_dimension_numbers<[1], [0], [0], [1], [0, 0, 1, 1], [], []>} : vector<32x72xf32>, vector<72x422xf32>, vector<32x422xf32> -> vector<32x422xf32>
    %c0_4 = arith.constant 0 : index
    %c0_5 = arith.constant 0 : index
    %14 = vector.load %arg4[%c0_4, %c0_5] : memref<32x1xf32, #tpu.memory_space<vmem>>, vector<32x1xf32>
    %15 = vector.broadcast %14 : vector<32x1xf32> to vector<32x422xf32>
    %16 = arith.addf %13, %15 : vector<32x422xf32>
    %cst_6 = arith.constant 0.000000e+00 : f32
    %17 = vector.broadcast %cst_6 : f32 to vector<32x422xf32>
    %18 = arith.maximumf %16, %17 : vector<32x422xf32>
    %c0_7 = arith.constant 0 : index
    %c0_8 = arith.constant 0 : index
    %19 = vector.load %arg2[%c0_7, %c0_8] : memref<1x422xf32, #tpu.memory_space<vmem>>, vector<1x422xf32>
    %20 = vector.broadcast %19 : vector<1x422xf32> to vector<32x422xf32>
    %21 = arith.mulf %18, %20 : vector<32x422xf32>
    %22 = vector.extract_strided_slice %21 {offsets = [0, 0], sizes = [32, 384], strides = [1, 1]} : vector<32x422xf32> to vector<32x384xf32>
    %23 = vector.extract_strided_slice %21 {offsets = [0, 1], sizes = [32, 384], strides = [1, 1]} : vector<32x422xf32> to vector<32x384xf32>
    %24 = vector.extract_strided_slice %21 {offsets = [0, 2], sizes = [32, 384], strides = [1, 1]} : vector<32x422xf32> to vector<32x384xf32>
    %25 = vector.extract_strided_slice %21 {offsets = [0, 18], sizes = [32, 384], strides = [1, 1]} : vector<32x422xf32> to vector<32x384xf32>
    %26 = vector.extract_strided_slice %21 {offsets = [0, 19], sizes = [32, 384], strides = [1, 1]} : vector<32x422xf32> to vector<32x384xf32>
    %27 = vector.extract_strided_slice %21 {offsets = [0, 20], sizes = [32, 384], strides = [1, 1]} : vector<32x422xf32> to vector<32x384xf32>
    %28 = vector.extract_strided_slice %21 {offsets = [0, 36], sizes = [32, 384], strides = [1, 1]} : vector<32x422xf32> to vector<32x384xf32>
    %29 = vector.extract_strided_slice %21 {offsets = [0, 37], sizes = [32, 384], strides = [1, 1]} : vector<32x422xf32> to vector<32x384xf32>
    %30 = vector.extract_strided_slice %21 {offsets = [0, 38], sizes = [32, 384], strides = [1, 1]} : vector<32x422xf32> to vector<32x384xf32>
    %31 = tpu.concatenate %22, %23, %24, %25, %26, %27, %28, %29, %30 in 0 : vector<32x384xf32>, vector<32x384xf32>, vector<32x384xf32>, vector<32x384xf32>, vector<32x384xf32>, vector<32x384xf32>, vector<32x384xf32>, vector<32x384xf32>, vector<32x384xf32> -> vector<288x384xf32>
    %c0_9 = arith.constant 0 : index
    %c0_10 = arith.constant 0 : index
    %32 = vector.load %arg5[%c0_9, %c0_10] : memref<16x288xf32, #tpu.memory_space<vmem>>, vector<16x288xf32>
    %cst_11 = arith.constant dense<0.000000e+00> : vector<16x384xf32>
    %33 = tpu.matmul %32, %31, %cst_11 {dimension_numbers = #tpu.dot_dimension_numbers<[1], [0], [0], [1], [0, 0, 1, 1], [], []>} : vector<16x288xf32>, vector<288x384xf32>, vector<16x384xf32> -> vector<16x384xf32>
    %c0_12 = arith.constant 0 : index
    %c0_13 = arith.constant 0 : index
    %34 = vector.load %arg6[%c0_12, %c0_13] : memref<16x1xf32, #tpu.memory_space<vmem>>, vector<16x1xf32>
    %35 = vector.broadcast %34 : vector<16x1xf32> to vector<16x384xf32>
    %36 = arith.addf %33, %35 : vector<16x384xf32>
    %c0_14 = arith.constant 0 : index
    %c0_15 = arith.constant 0 : index
    %c0_16 = arith.constant 0 : index
    %37 = vector.load %arg7[%c0_14, %c0_15, %c0_16] : memref<1x16x384xf32, #tpu.memory_space<vmem>>, vector<1x16x384xf32>
    %38 = vector.shape_cast %37 : vector<1x16x384xf32> to vector<16x384xf32>
    %39 = vector.shape_cast %36 : vector<16x384xf32> to vector<1x16x384xf32>
    tpu.vector_store %arg7[%c0_14, %c0_15, %c0_16], %39 {strides = array<i32>} : memref<1x16x384xf32, #tpu.memory_space<vmem>>, vector<1x16x384xf32>,
    return
  }
  func.func @transform_0(%arg0: i32) -> (i32, i32, i32) {
    %c0_i32 = arith.constant 0 : i32
    %c0_i32_0 = arith.constant 0 : i32
    %c0_i32_1 = arith.constant 0 : i32
    return %arg0, %c0_i32, %c0_i32_0 : i32, i32, i32
  }
  func.func @transform_1(%arg0: i32) -> (i32, i32) {
    %c0_i32 = arith.constant 0 : i32
    %c0_i32_0 = arith.constant 0 : i32
    %c0_i32_1 = arith.constant 0 : i32
    return %c0_i32, %c0_i32_0 : i32, i32
  }
  func.func @transform_2(%arg0: i32) -> (i32, i32) {
    %c0_i32 = arith.constant 0 : i32
    %c0_i32_0 = arith.constant 0 : i32
    %c0_i32_1 = arith.constant 0 : i32
    return %c0_i32, %c0_i32_0 : i32, i32
  }
  func.func @transform_3(%arg0: i32) -> (i32, i32) {
    %c0_i32 = arith.constant 0 : i32
    %c0_i32_0 = arith.constant 0 : i32
    %c0_i32_1 = arith.constant 0 : i32
    return %c0_i32, %c0_i32_0 : i32, i32
  }
  func.func @transform_4(%arg0: i32) -> (i32, i32) {
    %c0_i32 = arith.constant 0 : i32
    %c0_i32_0 = arith.constant 0 : i32
    %c0_i32_1 = arith.constant 0 : i32
    return %c0_i32, %c0_i32_0 : i32, i32
  }
  func.func @transform_5(%arg0: i32) -> (i32, i32) {
    %c0_i32 = arith.constant 0 : i32
    %c0_i32_0 = arith.constant 0 : i32
    %c0_i32_1 = arith.constant 0 : i32
    return %c0_i32, %c0_i32_0 : i32, i32
  }
  func.func @transform_6(%arg0: i32) -> (i32, i32, i32) {
    %c0_i32 = arith.constant 0 : i32
    %c0_i32_0 = arith.constant 0 : i32
    %c0_i32_1 = arith.constant 0 : i32
    return %arg0, %c0_i32, %c0_i32_0 : i32, i32, i32
  }
}

</mosaic_0001>

<llo_original>
// kernel: super_resolution_forward.1
$region0: #{super_resolution_forward.1}
  #allocation0 [shape = 'u32[]', space=smem, size = 0x4, offset = 0x4, fixed_abs, tag = 'smem constant byte address 0x4 - core index']
  #allocation1 [shape = 'u32[144,128]{1,0:T(1,128)}', space=vmem, size = 0x12000, scoped, tag = 'internal scratch']
  %s0 = inlined_call_operand.vmem [shape: f32[2,8,512], index: 0, kind: input, shape index: {}]
  %s1 = inlined_call_operand.vmem [shape: f32[1,422], index: 1, kind: input, shape index: {}]
  %s2 = inlined_call_operand.vmem [shape: f32[32,72], index: 2, kind: input, shape index: {}]
  %s3 = inlined_call_operand.vmem [shape: f32[32,1], index: 3, kind: input, shape index: {}]
  %s4 = inlined_call_operand.vmem [shape: f32[16,288], index: 4, kind: input, shape index: {}]
  %s5 = inlined_call_operand.vmem [shape: f32[16,1], index: 5, kind: input, shape index: {}]
  %s6 = inlined_call_operand.vmem [shape: f32[2,16,384], index: 6, kind: output, shape index: {}]
  %s7 = sld [smem:[#allocation0]]
  $region57: #{super_resolution_forward.1} parent=0
    _
  %s9 = ssub.s32 1, %s7
  %s10 = scalar_select 0, %s9, %s7
  loop: start=0, step=1, limit=4
  $region2: #{super_resolution_forward.1} parent=0 // loop_pre_header
    _
  $region3: #{super_resolution_forward.1} parent=0 // loop_header
    %s12 = sphi 0, %s16
    %p13 = scmp.ge.s32.totalorder %s12, 4
    %s22 = sphi 0, %s24
    %s25 = sphi 0, %s22
    %s26 = sphi 0, %s25
    %s42 = sphi 0, %s26
    %s46 = sphi 0, %s46
    %s48 = sphi 0, %s46
    %s49 = sphi 0, %s48
    %s63 = sphi 0, %s49
    %s67 = sphi 0, %s67
    %s69 = sphi 0, %s67
    %s70 = sphi 0, %s69
    %s84 = sphi 0, %s70
    %s88 = sphi 0, %s88
    %s90 = sphi 0, %s88
    %s91 = sphi 0, %s90
    %s105 = sphi 0, %s91
    %s109 = sphi 0, %s109
    %s111 = sphi 0, %s109
    %s112 = sphi 0, %s111
    %s126 = sphi 0, %s112
    %s130 = sphi 0, %s130
    %s132 = sphi 0, %s130
    %s133 = sphi 0, %s132
    %s147 = sphi 0, %s133
    %s153 = sphi 0, %s155
    %s156 = sphi 0, %s153
    %s157 = sphi 0, %s156
    %s173 = sphi 0, %s157
  $region4: #{super_resolution_forward.1} parent=0 // loop_header_branch
    %15 = sbr.rel (%p13) target = $region8
  $region5: #{super_resolution_forward.1} parent=0 // loop_body
    %s17 = ssub.s32 %s12, 1
    %s18 = ssub.s32 %s12, 2
    %s19 = sadd.s32 %s12, 1
    %s20 = ssub.s32 %s12, %s19
    %p21 = scmp.eq.s32.totalorder %s20, 0
    %s23 = sadd.s32 %s22, 1
    %s24 = scalar_select %p21, %s22, %s23
    %p27 = pneg %p21
    %p28 = scmp.eq.s32.totalorder %s12, 1
    %p29 = por %p27, %p28
    %p30 = scmp.ne.s32.totalorder %s22, %s25
    %p31 = scmp.eq.s32.totalorder %s12, 0
    %p32 = por %p30, %p31
    %p33 = scmp.ne.s32.totalorder %s22, %s25
    %p34 = scmp.eq.s32.totalorder %s17, 1
    %p35 = por %p33, %p34
    %p36 = scmp.ne.s32.totalorder %s25, %s26
    %p37 = scmp.eq.s32.totalorder %s17, 0
    %p38 = por %p36, %p37
    %p39 = scmp.ne.s32.totalorder %s25, %s26
    %p40 = scmp.eq.s32.totalorder %s18, 1
    %p41 = por %p39, %p40
    %p43 = scmp.ne.s32.totalorder %s26, %s42
    %p44 = scmp.eq.s32.totalorder %s18, 0
    %p45 = por %p43, %p44
    %s47 = sadd.s32 %s46, 1
    %p50 = scmp.eq.s32.totalorder %s12, 1
    %p51 = scmp.ne.s32.totalorder %s46, %s48
    %p52 = scmp.eq.s32.totalorder %s12, 0
    %p53 = por %p51, %p52
    %p54 = scmp.ne.s32.totalorder %s46, %s48
    %p55 = scmp.eq.s32.totalorder %s17, 1
    %p56 = por %p54, %p55
    %p57 = scmp.ne.s32.totalorder %s48, %s49
    %p58 = scmp.eq.s32.totalorder %s17, 0
    %p59 = por %p57, %p58
    %p60 = scmp.ne.s32.totalorder %s48, %s49
    %p61 = scmp.eq.s32.totalorder %s18, 1
    %p62 = por %p60, %p61
    %p64 = scmp.ne.s32.totalorder %s49, %s63
    %p65 = scmp.eq.s32.totalorder %s18, 0
    %p66 = por %p64, %p65
    %s68 = sadd.s32 %s67, 1
    %p71 = scmp.eq.s32.totalorder %s12, 1
    %p72 = scmp.ne.s32.totalorder %s67, %s69
    %p73 = scmp.eq.s32.totalorder %s12, 0
    %p74 = por %p72, %p73
    %p75 = scmp.ne.s32.totalorder %s67, %s69
    %p76 = scmp.eq.s32.totalorder %s17, 1
    %p77 = por %p75, %p76
    %p78 = scmp.ne.s32.totalorder %s69, %s70
    %p79 = scmp.eq.s32.totalorder %s17, 0
    %p80 = por %p78, %p79
    %p81 = scmp.ne.s32.totalorder %s69, %s70
    %p82 = scmp.eq.s32.totalorder %s18, 1
    %p83 = por %p81, %p82
    %p85 = scmp.ne.s32.totalorder %s70, %s84
    %p86 = scmp.eq.s32.totalorder %s18, 0
    %p87 = por %p85, %p86
    %s89 = sadd.s32 %s88, 1
    %p92 = scmp.eq.s32.totalorder %s12, 1
    %p93 = scmp.ne.s32.totalorder %s88, %s90
    %p94 = scmp.eq.s32.totalorder %s12, 0
    %p95 = por %p93, %p94
    %p96 = scmp.ne.s32.totalorder %s88, %s90
    %p97 = scmp.eq.s32.totalorder %s17, 1
    %p98 = por %p96, %p97
    %p99 = scmp.ne.s32.totalorder %s90, %s91
    %p100 = scmp.eq.s32.totalorder %s17, 0
    %p101 = por %p99, %p100
    %p102 = scmp.ne.s32.totalorder %s90, %s91
    %p103 = scmp.eq.s32.totalorder %s18, 1
    %p104 = por %p102, %p103
    %p106 = scmp.ne.s32.totalorder %s91, %s105
    %p107 = scmp.eq.s32.totalorder %s18, 0
    %p108 = por %p106, %p107
    %s110 = sadd.s32 %s109, 1
    %p113 = scmp.eq.s32.totalorder %s12, 1
    %p114 = scmp.ne.s32.totalorder %s109, %s111
    %p115 = scmp.eq.s32.totalorder %s12, 0
    %p116 = por %p114, %p115
    %p117 = scmp.ne.s32.totalorder %s109, %s111
    %p118 = scmp.eq.s32.totalorder %s17, 1
    %p119 = por %p117, %p118
    %p120 = scmp.ne.s32.totalorder %s111, %s112
    %p121 = scmp.eq.s32.totalorder %s17, 0
    %p122 = por %p120, %p121
    %p123 = scmp.ne.s32.totalorder %s111, %s112
    %p124 = scmp.eq.s32.totalorder %s18, 1
    %p125 = por %p123, %p124
    %p127 = scmp.ne.s32.totalorder %s112, %s126
    %p128 = scmp.eq.s32.totalorder %s18, 0
    %p129 = por %p127, %p128
    %s131 = sadd.s32 %s130, 1
    %p134 = scmp.eq.s32.totalorder %s12, 1
    %p135 = scmp.ne.s32.totalorder %s130, %s132
    %p136 = scmp.eq.s32.totalorder %s12, 0
    %p137 = por %p135, %p136
    %p138 = scmp.ne.s32.totalorder %s130, %s132
    %p139 = scmp.eq.s32.totalorder %s17, 1
    %p140 = por %p138, %p139
    %p141 = scmp.ne.s32.totalorder %s132, %s133
    %p142 = scmp.eq.s32.totalorder %s17, 0
    %p143 = por %p141, %p142
    %p144 = scmp.ne.s32.totalorder %s132, %s133
    %p145 = scmp.eq.s32.totalorder %s18, 1
    %p146 = por %p144, %p145
    %p148 = scmp.ne.s32.totalorder %s133, %s147
    %p149 = scmp.eq.s32.totalorder %s18, 0
    %p150 = por %p148, %p149
    %s151 = ssub.s32 %s12, %s19
    %p152 = scmp.eq.s32.totalorder %s151, 0
    %s154 = sadd.s32 %s153, 1
    %s155 = scalar_select %p152, %s153, %s154
    %p158 = pneg %p152
    %p159 = scmp.eq.s32.totalorder %s12, 1
    %p160 = por %p158, %p159
    %p161 = scmp.ne.s32.totalorder %s153, %s156
    %p162 = scmp.eq.s32.totalorder %s12, 0
    %p163 = por %p161, %p162
    %p164 = scmp.ne.s32.totalorder %s153, %s156
    %p165 = scmp.eq.s32.totalorder %s17, 1
    %p166 = por %p164, %p165
    %p167 = scmp.ne.s32.totalorder %s156, %s157
    %p168 = scmp.eq.s32.totalorder %s17, 0
    %p169 = por %p167, %p168
    %p170 = scmp.ne.s32.totalorder %s156, %s157
    %p171 = scmp.eq.s32.totalorder %s18, 1
    %p172 = por %p170, %p171
    %p174 = scmp.ne.s32.totalorder %s157, %s173
    %p175 = scmp.eq.s32.totalorder %s18, 0
    %p176 = por %p174, %p175
    %p177 = scmp.le.s32.totalorder 1, %s12
    %p178 = scmp.lt.s32.totalorder %s12, 3
    %p179 = pnand %p177, %p178
    %p180 = pneg %p179
    // Predicated region
    $region9: #{super_resolution_forward.1} parent=5 // pred_check
      _
    $region10: #{super_resolution_forward.1} parent=5 // pred_check_branch
      %182 = sbr.rel (%p179) target = $region12
    $region11: #{super_resolution_forward.1} parent=5 // pred_region
      %s183 = ssub.s32 %s12, 1
      // Predicated region
      $region13: #{super_resolution_forward.1} parent=11 // pred_check
        %p184 = pneg %p59
      $region14: #{super_resolution_forward.1} parent=11 // pred_check_branch
        %186 = sbr.rel (%p184) target = $region16
      $region15: #{super_resolution_forward.1} parent=11 // pred_region
        _
      $region16: #{super_resolution_forward.1} parent=11 // pred_fallthru
        _
      // Predicated region
      $region17: #{super_resolution_forward.1} parent=11 // pred_check
        %p187 = pneg %p80
      $region18: #{super_resolution_forward.1} parent=11 // pred_check_branch
        %189 = sbr.rel (%p187) target = $region20
      $region19: #{super_resolution_forward.1} parent=11 // pred_region
        _
      $region20: #{super_resolution_forward.1} parent=11 // pred_fallthru
        _
      // Predicated region
      $region21: #{super_resolution_forward.1} parent=11 // pred_check
        %p190 = pneg %p101
      $region22: #{super_resolution_forward.1} parent=11 // pred_check_branch
        %192 = sbr.rel (%p190) target = $region24
      $region23: #{super_resolution_forward.1} parent=11 // pred_region
        _
      $region24: #{super_resolution_forward.1} parent=11 // pred_fallthru
        _
      // Predicated region
      $region25: #{super_resolution_forward.1} parent=11 // pred_check
        %p193 = pneg %p122
      $region26: #{super_resolution_forward.1} parent=11 // pred_check_branch
        %195 = sbr.rel (%p193) target = $region28
      $region27: #{super_resolution_forward.1} parent=11 // pred_region
        _
      $region28: #{super_resolution_forward.1} parent=11 // pred_fallthru
        _
      // Predicated region
      $region29: #{super_resolution_forward.1} parent=11 // pred_check
        %p196 = pneg %p143
      $region30: #{super_resolution_forward.1} parent=11 // pred_check_branch
        %198 = sbr.rel (%p196) target = $region32
      $region31: #{super_resolution_forward.1} parent=11 // pred_region
        _
      $region32: #{super_resolution_forward.1} parent=11 // pred_fallthru
        _
    $region12: #{super_resolution_forward.1} parent=5 // pred_fallthru
      _
    %p199 = scmp.lt.s32.totalorder %s12, 2
    // Predicated region
    $region33: #{super_resolution_forward.1} parent=5 // pred_check
      %p200 = pneg %p199
    $region34: #{super_resolution_forward.1} parent=5 // pred_check_branch
      %202 = sbr.rel (%p200) target = $region36
    $region35: #{super_resolution_forward.1} parent=5 // pred_region
      // Predicated region
      $region37: #{super_resolution_forward.1} parent=35 // pred_check
        %p203 = pneg %p32
      $region38: #{super_resolution_forward.1} parent=35 // pred_check_branch
        %205 = sbr.rel (%p203) target = $region40
      $region39: #{super_resolution_forward.1} parent=35 // pred_region
        %p206 = scmp.lt.s32.totalorder %s12, 1
        %s207 = scalar_select %p206, %s12, 1
        %s208 = smul.addr %s207, 4
        %s209 = smul.addr %s208, 8
        %s210 = scalar_lea.vmem %s0, %s209
      $region40: #{super_resolution_forward.1} parent=35 // pred_fallthru
        _
    $region36: #{super_resolution_forward.1} parent=5 // pred_fallthru
      _
    %p211 = scmp.le.s32.totalorder 1, %s12
    %p212 = scmp.lt.s32.totalorder %s12, 3
    %p213 = pnand %p211, %p212
    %p214 = pneg %p213
    // Predicated region
    $region41: #{super_resolution_forward.1} parent=5 // pred_check
      _
    $region42: #{super_resolution_forward.1} parent=5 // pred_check_branch
      %216 = sbr.rel (%p213) target = $region44
    $region43: #{super_resolution_forward.1} parent=5 // pred_region
      %s217 = ssub.s32 %s12, 1
      %p218 = scmp.lt.s32.totalorder %s17, 1
      %s219 = scalar_select %p218, %s17, 1
      %s220 = smul.addr %s219, 4
      %s221 = smul.addr %s220, 8
      %s222 = scalar_lea.vmem %s0, %s221
      %p223 = pneg %p38
      %p224 = pneg %p35
      %p225 = pneg %p59
      %p226 = pneg %p56
      %p227 = pneg %p80
      %p228 = pneg %p77
      %p229 = pneg %p101
      %p230 = pneg %p98
      %p231 = pneg %p122
      %p232 = pneg %p119
      %p233 = pneg %p143
      %p234 = pneg %p140
      %p235 = pneg %p169
      %p236 = pneg %p166
      %p237 = scmp.lt.s32.totalorder %s17, 1
      %s238 = scalar_select %p237, %s17, 1
      %s239 = smul.addr %s238, 6
      %s240 = smul.addr %s239, 8
      %s241 = scalar_lea.vmem %s6, %s240
      %p242 = scmp.lt.s32.totalorder %s17, 1
      %s243 = scalar_select %p242, %s17, 1
      %s244 = smul.addr %s243, 4
      %s245 = smul.addr %s244, 8
      %s246 = scalar_lea.vmem %s0, %s245
      %p247 = scmp.lt.s32.totalorder %s17, 1
      %s248 = scalar_select %p247, %s17, 1
      %s249 = smul.addr %s248, 6
      %s250 = smul.addr %s249, 8
      %s251 = scalar_lea.vmem %s6, %s250
      %v252 = vld [vmem:[%s246] sm:$0xff]
      %v253 = vld [vmem:[%s246 + $0x8] sm:$0xff]
      %v254 = vld [vmem:[%s246 + $0x10] sm:$0xff]
      %v255 = vld [vmem:[%s246 + $0x18] sm:$0xff]
      %260 = vrot.lane.b32.xlu0 %v252, 127
      %v261 = vpop.permute.xlu0 %260
      %262 = vrot.lane.b32.xlu0 %v253, 127
      %v263 = vpop.permute.xlu0 %262
      %264 = vrot.lane.b32.xlu0 %v254, 127
      %v265 = vpop.permute.xlu0 %264
      %266 = vrot.lane.b32.xlu0 %v255, 127
      %v267 = vpop.permute.xlu0 %266
      %vm268 = vcmask 1039360
      %v269 = vsel %vm268, %v261, %v263
      %v270 = vsel %vm268, %v263, %v265
      %v271 = vsel %vm268, %v265, %v267
      %272 = vrot.lane.b32.xlu0 %v252, 126
      %v273 = vpop.permute.xlu0 %272
      %274 = vrot.lane.b32.xlu0 %v253, 126
      %v275 = vpop.permute.xlu0 %274
      %276 = vrot.lane.b32.xlu0 %v254, 126
      %v277 = vpop.permute.xlu0 %276
      %278 = vrot.lane.b32.xlu0 %v255, 126
      %v279 = vpop.permute.xlu0 %278
      %vm280 = vcmask 1031168
      %v281 = vsel %vm280, %v273, %v275
      %v282 = vsel %vm280, %v275, %v277
      %v283 = vsel %vm280, %v277, %v279
      %284 = vrot.lane.b32.xlu0 %v252, 110
      %v285 = vpop.permute.xlu0 %284
      %286 = vrot.lane.b32.xlu0 %v253, 110
      %v287 = vpop.permute.xlu0 %286
      %288 = vrot.lane.b32.xlu0 %v254, 110
      %v289 = vpop.permute.xlu0 %288
      %290 = vrot.lane.b32.xlu0 %v255, 110
      %v291 = vpop.permute.xlu0 %290
      %vm292 = vcmask 900096
      %v293 = vsel %vm292, %v285, %v287
      %v294 = vsel %vm292, %v287, %v289
      %v295 = vsel %vm292, %v289, %v291
      %296 = vrot.lane.b32.xlu0 %v252, 109
      %v297 = vpop.permute.xlu0 %296
      %298 = vrot.lane.b32.xlu0 %v253, 109
      %v299 = vpop.permute.xlu0 %298
      %300 = vrot.lane.b32.xlu0 %v254, 109
      %v301 = vpop.permute.xlu0 %300
      %302 = vrot.lane.b32.xlu0 %v255, 109
      %v303 = vpop.permute.xlu0 %302
      %vm304 = vcmask 891904
      %v305 = vsel %vm304, %v297, %v299
      %v306 = vsel %vm304, %v299, %v301
      %v307 = vsel %vm304, %v301, %v303
      %308 = vrot.lane.b32.xlu0 %v252, 108
      %v309 = vpop.permute.xlu0 %308
      %310 = vrot.lane.b32.xlu0 %v253, 108
      %v311 = vpop.permute.xlu0 %310
      %312 = vrot.lane.b32.xlu0 %v254, 108
      %v313 = vpop.permute.xlu0 %312
      %314 = vrot.lane.b32.xlu0 %v255, 108
      %v315 = vpop.permute.xlu0 %314
      %vm316 = vcmask 883712
      %v317 = vsel %vm316, %v309, %v311
      %v318 = vsel %vm316, %v311, %v313
      %v319 = vsel %vm316, %v313, %v315
      %320 = vrot.lane.b32.xlu0 %v252, 92
      %v321 = vpop.permute.xlu0 %320
      %322 = vrot.lane.b32.xlu0 %v253, 92
      %v323 = vpop.permute.xlu0 %322
      %324 = vrot.lane.b32.xlu0 %v254, 92
      %v325 = vpop.permute.xlu0 %324
      %326 = vrot.lane.b32.xlu0 %v255, 92
      %v327 = vpop.permute.xlu0 %326
      %vm328 = vcmask 752640
      %v329 = vsel %vm328, %v321, %v323
      %v330 = vsel %vm328, %v323, %v325
      %v331 = vsel %vm328, %v325, %v327
      %332 = vrot.lane.b32.xlu0 %v252, 91
      %v333 = vpop.permute.xlu0 %332
      %334 = vrot.lane.b32.xlu0 %v253, 91
      %v335 = vpop.permute.xlu0 %334
      %336 = vrot.lane.b32.xlu0 %v254, 91
      %v337 = vpop.permute.xlu0 %336
      %338 = vrot.lane.b32.xlu0 %v255, 91
      %v339 = vpop.permute.xlu0 %338
      %vm340 = vcmask 744448
      %v341 = vsel %vm340, %v333, %v335
      %v342 = vsel %vm340, %v335, %v337
      %v343 = vsel %vm340, %v337, %v339
      %344 = vrot.lane.b32.xlu0 %v252, 90
      %v345 = vpop.permute.xlu0 %344
      %346 = vrot.lane.b32.xlu0 %v253, 90
      %v347 = vpop.permute.xlu0 %346
      %348 = vrot.lane.b32.xlu0 %v254, 90
      %v349 = vpop.permute.xlu0 %348
      %350 = vrot.lane.b32.xlu0 %v255, 90
      %v351 = vpop.permute.xlu0 %350
      %vm352 = vcmask 736256
      %v353 = vsel %vm352, %v345, %v347
      %v354 = vsel %vm352, %v347, %v349
      %v355 = vsel %vm352, %v349, %v351
      %v356 = vld [vmem:[%s2] sm:$0xff]
      %v357 = vld [vmem:[%s2 + $0x8] sm:$0xff]
      %v358 = vld [vmem:[%s2 + $0x10] sm:$0xff]
      %v359 = vld [vmem:[%s2 + $0x18] sm:$0xff]
      %v360 = vld [vmem:[%s3] sm:$0xff]
      %v361 = vld [vmem:[%s3 + $0x8] sm:$0xff]
      %v362 = vld [vmem:[%s3 + $0x10] sm:$0xff]
      %v363 = vld [vmem:[%s3 + $0x18] sm:$0xff]
      %365 = vset.pattern.permute.xlu0 0
      %366 = vperm.xlu0 %365, %v360
      %v367 = vpop.permute.xlu0 %366
      %370 = vset.pattern.permute.xlu0 0
      %371 = vperm.xlu0 %370, %v361
      %v372 = vpop.permute.xlu0 %371
      %375 = vset.pattern.permute.xlu0 0
      %376 = vperm.xlu0 %375, %v362
      %v377 = vpop.permute.xlu0 %376
      %380 = vset.pattern.permute.xlu0 0
      %381 = vperm.xlu0 %380, %v363
      %v382 = vpop.permute.xlu0 %381
      %384 = vrot.lane.b32.xlu0 %v252, 112
      %v385 = vpop.permute.xlu0 %384
      %386 = vrot.lane.b32.xlu0 %v253, 112
      %v387 = vpop.permute.xlu0 %386
      %388 = vrot.lane.b32.xlu0 %v254, 112
      %v389 = vpop.permute.xlu0 %388
      %390 = vrot.lane.b32.xlu0 %v255, 112
      %v391 = vpop.permute.xlu0 %390
      %392 = vrot.lane.b32.xlu0 %v269, 112
      %v393 = vpop.permute.xlu0 %392
      %394 = vrot.lane.b32.xlu0 %v270, 112
      %v395 = vpop.permute.xlu0 %394
      %396 = vrot.lane.b32.xlu0 %v271, 112
      %v397 = vpop.permute.xlu0 %396
      %398 = vrot.lane.b32.xlu0 %v267, 112
      %v399 = vpop.permute.xlu0 %398
      %400 = vrot.lane.b32.xlu0 %v281, 112
      %v401 = vpop.permute.xlu0 %400
      %402 = vrot.lane.b32.xlu0 %v282, 112
      %v403 = vpop.permute.xlu0 %402
      %404 = vrot.lane.b32.xlu0 %v283, 112
      %v405 = vpop.permute.xlu0 %404
      %406 = vrot.lane.b32.xlu0 %v279, 112
      %v407 = vpop.permute.xlu0 %406
      %408 = vrot.lane.b32.xlu0 %v293, 112
      %v409 = vpop.permute.xlu0 %408
      %410 = vrot.lane.b32.xlu0 %v294, 112
      %v411 = vpop.permute.xlu0 %410
      %412 = vrot.lane.b32.xlu0 %v295, 112
      %v413 = vpop.permute.xlu0 %412
      %414 = vrot.lane.b32.xlu0 %v291, 112
      %v415 = vpop.permute.xlu0 %414
      %416 = vrot.lane.b32.xlu0 %v305, 112
      %v417 = vpop.permute.xlu0 %416
      %418 = vrot.lane.b32.xlu0 %v306, 112
      %v419 = vpop.permute.xlu0 %418
      %420 = vrot.lane.b32.xlu0 %v307, 112
      %v421 = vpop.permute.xlu0 %420
      %422 = vrot.lane.b32.xlu0 %v303, 112
      %v423 = vpop.permute.xlu0 %422
      %424 = vrot.lane.b32.xlu0 %v317, 112
      %v425 = vpop.permute.xlu0 %424
      %426 = vrot.lane.b32.xlu0 %v318, 112
      %v427 = vpop.permute.xlu0 %426
      %428 = vrot.lane.b32.xlu0 %v319, 112
      %v429 = vpop.permute.xlu0 %428
      %430 = vrot.lane.b32.xlu0 %v315, 112
      %v431 = vpop.permute.xlu0 %430
      %432 = vrot.lane.b32.xlu0 %v329, 112
      %v433 = vpop.permute.xlu0 %432
      %434 = vrot.lane.b32.xlu0 %v330, 112
      %v435 = vpop.permute.xlu0 %434
      %436 = vrot.lane.b32.xlu0 %v331, 112
      %v437 = vpop.permute.xlu0 %436
      %438 = vrot.lane.b32.xlu0 %v327, 112
      %v439 = vpop.permute.xlu0 %438
      %440 = vrot.lane.b32.xlu0 %v341, 112
      %v441 = vpop.permute.xlu0 %440
      %442 = vrot.lane.b32.xlu0 %v342, 112
      %v443 = vpop.permute.xlu0 %442
      %444 = vrot.lane.b32.xlu0 %v343, 112
      %v445 = vpop.permute.xlu0 %444
      %446 = vrot.lane.b32.xlu0 %v339, 112
      %v447 = vpop.permute.xlu0 %446
      %448 = vrot.lane.b32.xlu0 %v353, 112
      %v449 = vpop.permute.xlu0 %448
      %450 = vrot.lane.b32.xlu0 %v354, 112
      %v451 = vpop.permute.xlu0 %450
      %452 = vrot.lane.b32.xlu0 %v355, 112
      %v453 = vpop.permute.xlu0 %452
      %454 = vrot.lane.b32.xlu0 %v351, 112
      %v455 = vpop.permute.xlu0 %454
      %vm456 = vcmask 916480
      %v457 = vsel %vm456, %v385, %v387
      %v458 = vsel %vm456, %v387, %v389
      %v459 = vsel %vm456, %v389, %v391
      %v460 = vsel %vm456, %v393, %v395
      %v461 = vsel %vm456, %v395, %v397
      %v462 = vsel %vm456, %v397, %v399
      %v463 = vsel %vm456, %v401, %v403
      %v464 = vsel %vm456, %v403, %v405
      %v465 = vsel %vm456, %v405, %v407
      %v466 = vsel %vm456, %v409, %v411
      %v467 = vsel %vm456, %v411, %v413
      %v468 = vsel %vm456, %v413, %v415
      %v469 = vsel %vm456, %v417, %v419
      %v470 = vsel %vm456, %v419, %v421
      %v471 = vsel %vm456, %v421, %v423
      %v472 = vsel %vm456, %v425, %v427
      %v473 = vsel %vm456, %v427, %v429
      %v474 = vsel %vm456, %v429, %v431
      %v475 = vsel %vm456, %v433, %v435
      %v476 = vsel %vm456, %v435, %v437
      %v477 = vsel %vm456, %v437, %v439
      %v478 = vsel %vm456, %v441, %v443
      %v479 = vsel %vm456, %v443, %v445
      %v480 = vsel %vm456, %v445, %v447
      %v481 = vsel %vm456, %v449, %v451
      %v482 = vsel %vm456, %v451, %v453
      %v483 = vsel %vm456, %v453, %v455
      %vm520 = vcmask 588800
      %v522 = vsel %vm520, %v356, 0
      %v525 = vsel %vm520, %v357, 0
      %v528 = vsel %vm520, %v358, 0
      %v531 = vsel %vm520, %v359, 0
      %533 = vmatprep.subr.mxu0 %v458
      %534 = vmatpush1.msra.mxu0 %v457
      %535 = vmatprep.subr.mxu0 %v461
      %536 = vmatpush1.msra.mxu0 %v460
      %537 = vmatprep.subr.mxu0 %v464
      %538 = vmatpush1.msra.mxu0 %v463
      %539 = vmatprep.subr.mxu0 %v467
      %540 = vmatpush1.msra.mxu0 %v466
      %541 = vmatprep.subr.mxu0 %v470
      %542 = vmatpush1.msra.mxu0 %v469
      %543 = vmatprep.subr.mxu0 %v473
      %544 = vmatpush1.msra.mxu0 %v472
      %545 = vmatprep.subr.mxu0 %v476
      %546 = vmatpush1.msra.mxu0 %v475
      %547 = vmatprep.subr.mxu0 %v479
      %548 = vmatpush1.msra.mxu0 %v478
      %549 = vmatprep.subr.mxu0 %v482
      %550 = vmatpush1.msra.mxu0 %v481
      %551 = vmatprep.subr.mxu0 0.0
      %552 = vmatpush1.msra.mxu0 0.0
      %553 = vmatprep.subr.mxu0 0.0
      %554 = vmatpush1.msra.mxu0 0.0
      %555 = vmatprep.subr.mxu0 0.0
      %556 = vmatpush1.msra.mxu0 0.0
      %557 = vmatprep.subr.mxu0 0.0
      %558 = vmatpush1.msra.mxu0 0.0
      %559 = vmatprep.subr.mxu0 0.0
      %560 = vmatpush1.msra.mxu0 0.0
      %561 = vmatprep.subr.mxu0 0.0
      %562 = vmatpush1.msra.mxu0 0.0
      %563 = vmatprep.subr.mxu0 0.0
      %564 = vmatpush1.msra.mxu0 0.0
      %565 = vmatprep.subr.mxu0 0.0
      %566 = vmatpush1.msra.mxu0 0.0
      %567 = vmatprep.subr.mxu0 0.0
      %568 = vmatpush1.msra.mxu0 0.0
      %569 = vmatprep.subr.mxu0 0.0
      %570 = vmatpush1.msra.mxu0 0.0
      %571 = vmatprep.subr.mxu0 0.0
      %572 = vmatpush1.msra.mxu0 0.0
      %573 = vmatprep.subr.mxu0 0.0
      %574 = vmatpush1.msra.mxu0 0.0
      %575 = vmatprep.subr.mxu0 0.0
      %576 = vmatpush1.msra.mxu0 0.0
      %577 = vmatprep.subr.mxu0 0.0
      %578 = vmatpush1.msra.mxu0 0.0
      %579 = vmatprep.subr.mxu0 0.0
      %580 = vmatpush1.msra.mxu0 0.0
      %581 = vmatprep.subr.mxu0 0.0
      %582 = vmatpush1.msra.mxu0 0.0
      %583 = vmatprep.subr.mxu0 0.0
      %584 = vmatpush1.msra.mxu0 0.0
      %585 = vmatprep.subr.mxu0 0.0
      %586 = vmatpush1.msra.mxu0 0.0
      %587 = vmatprep.subr.mxu0 0.0
      %588 = vmatpush1.msra.mxu0 0.0
      %589 = vmatprep.subr.mxu0 0.0
      %590 = vmatpush1.msra.mxu0 0.0
      %591 = vmatprep.subr.mxu0 0.0
      %592 = vmatpush1.msra.mxu0 0.0
      %593 = vmatprep.subr.mxu0 0.0
      %594 = vmatpush1.msra.mxu0 0.0
      %595 = vmatprep.subr.mxu0 0.0
      %596 = vmatpush1.msra.mxu0 0.0
      %597 = vmatprep.mubr.f32.mxu0 0.0
      %598 = vmatmul.mubr.f32.gmra.mrb[0].mxu0 %v522
      %v599 = vpop.f32.mrb[0].mxu0
      %v600 = vadd.f32 %v367, %v599
      %v601 = vpop.f32.mrb[0].mxu0
      %v602 = vadd.f32 %v367, %v601
      %603 = vmatprep.mubr.f32.mxu0 0.0
      %604 = vmatmul.mubr.f32.gmra.mrb[0].mxu0 %v525
      %v605 = vpop.f32.mrb[0].mxu0
      %v606 = vadd.f32 %v372, %v605
      %v607 = vpop.f32.mrb[0].mxu0
      %v608 = vadd.f32 %v372, %v607
      %609 = vmatprep.mubr.f32.mxu0 0.0
      %610 = vmatmul.mubr.f32.gmra.mrb[0].mxu0 %v528
      %v611 = vpop.f32.mrb[0].mxu0
      %v612 = vadd.f32 %v377, %v611
      %v613 = vpop.f32.mrb[0].mxu0
      %v614 = vadd.f32 %v377, %v613
      %615 = vmatprep.mubr.f32.mxu0 0.0
      %616 = vmatmul.mubr.f32.gmra.mrb[0].mxu0 %v531
      %v617 = vpop.f32.mrb[0].mxu0
      %v618 = vadd.f32 %v382, %v617
      %v619 = vpop.f32.mrb[0].mxu0
      %v620 = vadd.f32 %v382, %v619
      %621 = vdwg.mxu0
      %622 = vmatprep.subr.mxu0 %v391
      %623 = vmatpush1.msra.mxu0 %v459
      %624 = vmatprep.subr.mxu0 %v399
      %625 = vmatpush1.msra.mxu0 %v462
      %626 = vmatprep.subr.mxu0 %v407
      %627 = vmatpush1.msra.mxu0 %v465
      %628 = vmatprep.subr.mxu0 %v415
      %629 = vmatpush1.msra.mxu0 %v468
      %630 = vmatprep.subr.mxu0 %v423
      %631 = vmatpush1.msra.mxu0 %v471
      %632 = vmatprep.subr.mxu0 %v431
      %633 = vmatpush1.msra.mxu0 %v474
      %634 = vmatprep.subr.mxu0 %v439
      %635 = vmatpush1.msra.mxu0 %v477
      %636 = vmatprep.subr.mxu0 %v447
      %637 = vmatpush1.msra.mxu0 %v480
      %638 = vmatprep.subr.mxu0 %v455
      %639 = vmatpush1.msra.mxu0 %v483
      %640 = vmatprep.subr.mxu0 0.0
      %641 = vmatpush1.msra.mxu0 0.0
      %642 = vmatprep.subr.mxu0 0.0
      %643 = vmatpush1.msra.mxu0 0.0
      %644 = vmatprep.subr.mxu0 0.0
      %645 = vmatpush1.msra.mxu0 0.0
      %646 = vmatprep.subr.mxu0 0.0
      %647 = vmatpush1.msra.mxu0 0.0
      %648 = vmatprep.subr.mxu0 0.0
      %649 = vmatpush1.msra.mxu0 0.0
      %650 = vmatprep.subr.mxu0 0.0
      %651 = vmatpush1.msra.mxu0 0.0
      %652 = vmatprep.subr.mxu0 0.0
      %653 = vmatpush1.msra.mxu0 0.0
      %654 = vmatprep.subr.mxu0 0.0
      %655 = vmatpush1.msra.mxu0 0.0
      %656 = vmatprep.subr.mxu0 0.0
      %657 = vmatpush1.msra.mxu0 0.0
      %658 = vmatprep.subr.mxu0 0.0
      %659 = vmatpush1.msra.mxu0 0.0
      %660 = vmatprep.subr.mxu0 0.0
      %661 = vmatpush1.msra.mxu0 0.0
      %662 = vmatprep.subr.mxu0 0.0
      %663 = vmatpush1.msra.mxu0 0.0
      %664 = vmatprep.subr.mxu0 0.0
      %665 = vmatpush1.msra.mxu0 0.0
      %666 = vmatprep.subr.mxu0 0.0
      %667 = vmatpush1.msra.mxu0 0.0
      %668 = vmatprep.subr.mxu0 0.0
      %669 = vmatpush1.msra.mxu0 0.0
      %670 = vmatprep.subr.mxu0 0.0
      %671 = vmatpush1.msra.mxu0 0.0
      %672 = vmatprep.subr.mxu0 0.0
      %673 = vmatpush1.msra.mxu0 0.0
      %674 = vmatprep.subr.mxu0 0.0
      %675 = vmatpush1.msra.mxu0 0.0
      %676 = vmatprep.subr.mxu0 0.0
      %677 = vmatpush1.msra.mxu0 0.0
      %678 = vmatprep.subr.mxu0 0.0
      %679 = vmatpush1.msra.mxu0 0.0
      %680 = vmatprep.subr.mxu0 0.0
      %681 = vmatpush1.msra.mxu0 0.0
      %682 = vmatprep.subr.mxu0 0.0
      %683 = vmatpush1.msra.mxu0 0.0
      %684 = vmatprep.subr.mxu0 0.0
      %685 = vmatpush1.msra.mxu0 0.0
      %686 = vmatprep.mubr.f32.mxu0 0.0
      %687 = vmatmul.mubr.f32.gmra.mrb[0].mxu0 %v522
      %v688 = vpop.f32.mrb[0].mxu0
      %v689 = vadd.f32 %v367, %v688
      %v690 = vpop.f32.mrb[0].mxu0
      %v691 = vadd.f32 %v367, %v690
      %692 = vmatprep.mubr.f32.mxu0 0.0
      %693 = vmatmul.mubr.f32.gmra.mrb[0].mxu0 %v525
      %v694 = vpop.f32.mrb[0].mxu0
      %v695 = vadd.f32 %v372, %v694
      %v696 = vpop.f32.mrb[0].mxu0
      %v697 = vadd.f32 %v372, %v696
      %698 = vmatprep.mubr.f32.mxu0 0.0
      %699 = vmatmul.mubr.f32.gmra.mrb[0].mxu0 %v528
      %v700 = vpop.f32.mrb[0].mxu0
      %v701 = vadd.f32 %v377, %v700
      %v702 = vpop.f32.mrb[0].mxu0
      %v703 = vadd.f32 %v377, %v702
      %704 = vmatprep.mubr.f32.mxu0 0.0
      %705 = vmatmul.mubr.f32.gmra.mrb[0].mxu0 %v531
      %v706 = vpop.f32.mrb[0].mxu0
      %v707 = vadd.f32 %v382, %v706
      %v708 = vpop.f32.mrb[0].mxu0
      %v709 = vadd.f32 %v382, %v708
      %710 = vdwg.mxu0
      %v711 = vmax.f32 %v600, 0.0
      %v712 = vmax.f32 %v602, 0.0
      %v713 = vmax.f32 %v689, 0.0
      %v714 = vmax.f32 %v691, 0.0
      %v715 = vmax.f32 %v606, 0.0
      %v716 = vmax.f32 %v608, 0.0
      %v717 = vmax.f32 %v695, 0.0
      %v718 = vmax.f32 %v697, 0.0
      %v719 = vmax.f32 %v612, 0.0
      %v720 = vmax.f32 %v614, 0.0
      %v721 = vmax.f32 %v701, 0.0
      %v722 = vmax.f32 %v703, 0.0
      %v723 = vmax.f32 %v618, 0.0
      %v724 = vmax.f32 %v620, 0.0
      %v725 = vmax.f32 %v707, 0.0
      %v726 = vmax.f32 %v709, 0.0
      %v727 = vld [vmem:[%s1] sm:$0xf]
      %v729 = vlaneseq
      %v730 = vshrl.u32 %v729, 7
      %v731 = vsub.s32 0, %v730
      %v732 = vrot.slane %v727, %v731
      %v733 = vlaneseq
      %v734 = vshrl.u32 %v733, 7
      %v735 = vsub.s32 1, %v734
      %v736 = vrot.slane %v727, %v735
      %v737 = vlaneseq
      %v738 = vshrl.u32 %v737, 7
      %v739 = vsub.s32 2, %v738
      %v740 = vrot.slane %v727, %v739
      %v741 = vlaneseq
      %v742 = vshrl.u32 %v741, 7
      %v743 = vsub.s32 3, %v742
      %v744 = vrot.slane %v727, %v743
      %v749 = vmul.f32 %v711, %v732
      %v750 = vmul.f32 %v712, %v736
      %v751 = vmul.f32 %v713, %v740
      %v752 = vmul.f32 %v714, %v744
      %v753 = vmul.f32 %v715, %v732
      %v754 = vmul.f32 %v716, %v736
      %v755 = vmul.f32 %v717, %v740
      %v756 = vmul.f32 %v718, %v744
      %v757 = vmul.f32 %v719, %v732
      %v758 = vmul.f32 %v720, %v736
      %v759 = vmul.f32 %v721, %v740
      %v760 = vmul.f32 %v722, %v744
      %v761 = vmul.f32 %v723, %v732
      %v762 = vmul.f32 %v724, %v736
      %v763 = vmul.f32 %v725, %v740
      %v764 = vmul.f32 %v726, %v744
      %781 = vrot.lane.b32.xlu0 %v749, 127
      %v782 = vpop.permute.xlu0 %781
      %783 = vrot.lane.b32.xlu0 %v750, 127
      %v784 = vpop.permute.xlu0 %783
      %785 = vrot.lane.b32.xlu0 %v751, 127
      %v786 = vpop.permute.xlu0 %785
      %787 = vrot.lane.b32.xlu0 %v752, 127
      %v788 = vpop.permute.xlu0 %787
      %789 = vrot.lane.b32.xlu0 %v753, 127
      %v790 = vpop.permute.xlu0 %789
      %791 = vrot.lane.b32.xlu0 %v754, 127
      %v792 = vpop.permute.xlu0 %791
      %793 = vrot.lane.b32.xlu0 %v755, 127
      %v794 = vpop.permute.xlu0 %793
      %795 = vrot.lane.b32.xlu0 %v756, 127
      %v796 = vpop.permute.xlu0 %795
      %797 = vrot.lane.b32.xlu0 %v757, 127
      %v798 = vpop.permute.xlu0 %797
      %799 = vrot.lane.b32.xlu0 %v758, 127
      %v800 = vpop.permute.xlu0 %799
      %801 = vrot.lane.b32.xlu0 %v759, 127
      %v802 = vpop.permute.xlu0 %801
      %803 = vrot.lane.b32.xlu0 %v760, 127
      %v804 = vpop.permute.xlu0 %803
      %805 = vrot.lane.b32.xlu0 %v761, 127
      %v806 = vpop.permute.xlu0 %805
      %807 = vrot.lane.b32.xlu0 %v762, 127
      %v808 = vpop.permute.xlu0 %807
      %809 = vrot.lane.b32.xlu0 %v763, 127
      %v810 = vpop.permute.xlu0 %809
      %811 = vrot.lane.b32.xlu0 %v764, 127
      %v812 = vpop.permute.xlu0 %811
      %v813 = vsel %vm268, %v782, %v784
      %v814 = vsel %vm268, %v784, %v786
      %v815 = vsel %vm268, %v786, %v788
      %v816 = vsel %vm268, %v790, %v792
      %v817 = vsel %vm268, %v792, %v794
      %v818 = vsel %vm268, %v794, %v796
      %v819 = vsel %vm268, %v798, %v800
      %v820 = vsel %vm268, %v800, %v802
      %v821 = vsel %vm268, %v802, %v804
      %v822 = vsel %vm268, %v806, %v808
      %v823 = vsel %vm268, %v808, %v810
      %v824 = vsel %vm268, %v810, %v812
      %837 = vrot.lane.b32.xlu0 %v749, 126
      %v838 = vpop.permute.xlu0 %837
      %839 = vrot.lane.b32.xlu0 %v750, 126
      %v840 = vpop.permute.xlu0 %839
      %841 = vrot.lane.b32.xlu0 %v751, 126
      %v842 = vpop.permute.xlu0 %841
      %843 = vrot.lane.b32.xlu0 %v752, 126
      %v844 = vpop.permute.xlu0 %843
      %845 = vrot.lane.b32.xlu0 %v753, 126
      %v846 = vpop.permute.xlu0 %845
      %847 = vrot.lane.b32.xlu0 %v754, 126
      %v848 = vpop.permute.xlu0 %847
      %849 = vrot.lane.b32.xlu0 %v755, 126
      %v850 = vpop.permute.xlu0 %849
      %851 = vrot.lane.b32.xlu0 %v756, 126
      %v852 = vpop.permute.xlu0 %851
      %853 = vrot.lane.b32.xlu0 %v757, 126
      %v854 = vpop.permute.xlu0 %853
      %855 = vrot.lane.b32.xlu0 %v758, 126
      %v856 = vpop.permute.xlu0 %855
      %857 = vrot.lane.b32.xlu0 %v759, 126
      %v858 = vpop.permute.xlu0 %857
      %859 = vrot.lane.b32.xlu0 %v760, 126
      %v860 = vpop.permute.xlu0 %859
      %861 = vrot.lane.b32.xlu0 %v761, 126
      %v862 = vpop.permute.xlu0 %861
      %863 = vrot.lane.b32.xlu0 %v762, 126
      %v864 = vpop.permute.xlu0 %863
      %865 = vrot.lane.b32.xlu0 %v763, 126
      %v866 = vpop.permute.xlu0 %865
      %867 = vrot.lane.b32.xlu0 %v764, 126
      %v868 = vpop.permute.xlu0 %867
      %v869 = vsel %vm280, %v838, %v840
      %v870 = vsel %vm280, %v840, %v842
      %v871 = vsel %vm280, %v842, %v844
      %v872 = vsel %vm280, %v846, %v848
      %v873 = vsel %vm280, %v848, %v850
      %v874 = vsel %vm280, %v850, %v852
      %v875 = vsel %vm280, %v854, %v856
      %v876 = vsel %vm280, %v856, %v858
      %v877 = vsel %vm280, %v858, %v860
      %v878 = vsel %vm280, %v862, %v864
      %v879 = vsel %vm280, %v864, %v866
      %v880 = vsel %vm280, %v866, %v868
      %893 = vrot.lane.b32.xlu0 %v749, 110
      %v894 = vpop.permute.xlu0 %893
      %895 = vrot.lane.b32.xlu0 %v750, 110
      %v896 = vpop.permute.xlu0 %895
      %897 = vrot.lane.b32.xlu0 %v751, 110
      %v898 = vpop.permute.xlu0 %897
      %899 = vrot.lane.b32.xlu0 %v752, 110
      %v900 = vpop.permute.xlu0 %899
      %901 = vrot.lane.b32.xlu0 %v753, 110
      %v902 = vpop.permute.xlu0 %901
      %903 = vrot.lane.b32.xlu0 %v754, 110
      %v904 = vpop.permute.xlu0 %903
      %905 = vrot.lane.b32.xlu0 %v755, 110
      %v906 = vpop.permute.xlu0 %905
      %907 = vrot.lane.b32.xlu0 %v756, 110
      %v908 = vpop.permute.xlu0 %907
      %909 = vrot.lane.b32.xlu0 %v757, 110
      %v910 = vpop.permute.xlu0 %909
      %911 = vrot.lane.b32.xlu0 %v758, 110
      %v912 = vpop.permute.xlu0 %911
      %913 = vrot.lane.b32.xlu0 %v759, 110
      %v914 = vpop.permute.xlu0 %913
      %915 = vrot.lane.b32.xlu0 %v760, 110
      %v916 = vpop.permute.xlu0 %915
      %917 = vrot.lane.b32.xlu0 %v761, 110
      %v918 = vpop.permute.xlu0 %917
      %919 = vrot.lane.b32.xlu0 %v762, 110
      %v920 = vpop.permute.xlu0 %919
      %921 = vrot.lane.b32.xlu0 %v763, 110
      %v922 = vpop.permute.xlu0 %921
      %923 = vrot.lane.b32.xlu0 %v764, 110
      %v924 = vpop.permute.xlu0 %923
      %v925 = vsel %vm292, %v894, %v896
      %v926 = vsel %vm292, %v896, %v898
      %v927 = vsel %vm292, %v898, %v900
      %v928 = vsel %vm292, %v902, %v904
      %v929 = vsel %vm292, %v904, %v906
      %v930 = vsel %vm292, %v906, %v908
      %v931 = vsel %vm292, %v910, %v912
      %v932 = vsel %vm292, %v912, %v914
      %v933 = vsel %vm292, %v914, %v916
      %v934 = vsel %vm292, %v918, %v920
      %v935 = vsel %vm292, %v920, %v922
      %v936 = vsel %vm292, %v922, %v924
      %949 = vrot.lane.b32.xlu0 %v749, 109
      %v950 = vpop.permute.xlu0 %949
      %951 = vrot.lane.b32.xlu0 %v750, 109
      %v952 = vpop.permute.xlu0 %951
      %953 = vrot.lane.b32.xlu0 %v751, 109
      %v954 = vpop.permute.xlu0 %953
      %955 = vrot.lane.b32.xlu0 %v752, 109
      %v956 = vpop.permute.xlu0 %955
      %957 = vrot.lane.b32.xlu0 %v753, 109
      %v958 = vpop.permute.xlu0 %957
      %959 = vrot.lane.b32.xlu0 %v754, 109
      %v960 = vpop.permute.xlu0 %959
      %961 = vrot.lane.b32.xlu0 %v755, 109
      %v962 = vpop.permute.xlu0 %961
      %963 = vrot.lane.b32.xlu0 %v756, 109
      %v964 = vpop.permute.xlu0 %963
      %965 = vrot.lane.b32.xlu0 %v757, 109
      %v966 = vpop.permute.xlu0 %965
      %967 = vrot.lane.b32.xlu0 %v758, 109
      %v968 = vpop.permute.xlu0 %967
      %969 = vrot.lane.b32.xlu0 %v759, 109
      %v970 = vpop.permute.xlu0 %969
      %971 = vrot.lane.b32.xlu0 %v760, 109
      %v972 = vpop.permute.xlu0 %971
      %973 = vrot.lane.b32.xlu0 %v761, 109
      %v974 = vpop.permute.xlu0 %973
      %975 = vrot.lane.b32.xlu0 %v762, 109
      %v976 = vpop.permute.xlu0 %975
      %977 = vrot.lane.b32.xlu0 %v763, 109
      %v978 = vpop.permute.xlu0 %977
      %979 = vrot.lane.b32.xlu0 %v764, 109
      %v980 = vpop.permute.xlu0 %979
      %v981 = vsel %vm304, %v950, %v952
      %v982 = vsel %vm304, %v952, %v954
      %v983 = vsel %vm304, %v954, %v956
      %v984 = vsel %vm304, %v958, %v960
      %v985 = vsel %vm304, %v960, %v962
      %v986 = vsel %vm304, %v962, %v964
      %v987 = vsel %vm304, %v966, %v968
      %v988 = vsel %vm304, %v968, %v970
      %v989 = vsel %vm304, %v970, %v972
      %v990 = vsel %vm304, %v974, %v976
      %v991 = vsel %vm304, %v976, %v978
      %v992 = vsel %vm304, %v978, %v980
      %1005 = vrot.lane.b32.xlu0 %v749, 108
      %v1006 = vpop.permute.xlu0 %1005
      %1007 = vrot.lane.b32.xlu0 %v750, 108
      %v1008 = vpop.permute.xlu0 %1007
      %1009 = vrot.lane.b32.xlu0 %v751, 108
      %v1010 = vpop.permute.xlu0 %1009
      %1011 = vrot.lane.b32.xlu0 %v752, 108
      %v1012 = vpop.permute.xlu0 %1011
      %1013 = vrot.lane.b32.xlu0 %v753, 108
      %v1014 = vpop.permute.xlu0 %1013
      %1015 = vrot.lane.b32.xlu0 %v754, 108
      %v1016 = vpop.permute.xlu0 %1015
      %1017 = vrot.lane.b32.xlu0 %v755, 108
      %v1018 = vpop.permute.xlu0 %1017
      %1019 = vrot.lane.b32.xlu0 %v756, 108
      %v1020 = vpop.permute.xlu0 %1019
      %1021 = vrot.lane.b32.xlu0 %v757, 108
      %v1022 = vpop.permute.xlu0 %1021
      %1023 = vrot.lane.b32.xlu0 %v758, 108
      %v1024 = vpop.permute.xlu0 %1023
      %1025 = vrot.lane.b32.xlu0 %v759, 108
      %v1026 = vpop.permute.xlu0 %1025
      %1027 = vrot.lane.b32.xlu0 %v760, 108
      %v1028 = vpop.permute.xlu0 %1027
      %1029 = vrot.lane.b32.xlu0 %v761, 108
      %v1030 = vpop.permute.xlu0 %1029
      %1031 = vrot.lane.b32.xlu0 %v762, 108
      %v1032 = vpop.permute.xlu0 %1031
      %1033 = vrot.lane.b32.xlu0 %v763, 108
      %v1034 = vpop.permute.xlu0 %1033
      %1035 = vrot.lane.b32.xlu0 %v764, 108
      %v1036 = vpop.permute.xlu0 %1035
      %v1037 = vsel %vm316, %v1006, %v1008
      %v1038 = vsel %vm316, %v1008, %v1010
      %v1039 = vsel %vm316, %v1010, %v1012
      %v1040 = vsel %vm316, %v1014, %v1016
      %v1041 = vsel %vm316, %v1016, %v1018
      %v1042 = vsel %vm316, %v1018, %v1020
      %v1043 = vsel %vm316, %v1022, %v1024
      %v1044 = vsel %vm316, %v1024, %v1026
      %v1045 = vsel %vm316, %v1026, %v1028
      %v1046 = vsel %vm316, %v1030, %v1032
      %v1047 = vsel %vm316, %v1032, %v1034
      %v1048 = vsel %vm316, %v1034, %v1036
      %1061 = vrot.lane.b32.xlu0 %v749, 92
      %v1062 = vpop.permute.xlu0 %1061
      %1063 = vrot.lane.b32.xlu0 %v750, 92
      %v1064 = vpop.permute.xlu0 %1063
      %1065 = vrot.lane.b32.xlu0 %v751, 92
      %v1066 = vpop.permute.xlu0 %1065
      %1067 = vrot.lane.b32.xlu0 %v752, 92
      %v1068 = vpop.permute.xlu0 %1067
      %1069 = vrot.lane.b32.xlu0 %v753, 92
      %v1070 = vpop.permute.xlu0 %1069
      %1071 = vrot.lane.b32.xlu0 %v754, 92
      %v1072 = vpop.permute.xlu0 %1071
      %1073 = vrot.lane.b32.xlu0 %v755, 92
      %v1074 = vpop.permute.xlu0 %1073
      %1075 = vrot.lane.b32.xlu0 %v756, 92
      %v1076 = vpop.permute.xlu0 %1075
      %1077 = vrot.lane.b32.xlu0 %v757, 92
      %v1078 = vpop.permute.xlu0 %1077
      %1079 = vrot.lane.b32.xlu0 %v758, 92
      %v1080 = vpop.permute.xlu0 %1079
      %1081 = vrot.lane.b32.xlu0 %v759, 92
      %v1082 = vpop.permute.xlu0 %1081
      %1083 = vrot.lane.b32.xlu0 %v760, 92
      %v1084 = vpop.permute.xlu0 %1083
      %1085 = vrot.lane.b32.xlu0 %v761, 92
      %v1086 = vpop.permute.xlu0 %1085
      %1087 = vrot.lane.b32.xlu0 %v762, 92
      %v1088 = vpop.permute.xlu0 %1087
      %1089 = vrot.lane.b32.xlu0 %v763, 92
      %v1090 = vpop.permute.xlu0 %1089
      %1091 = vrot.lane.b32.xlu0 %v764, 92
      %v1092 = vpop.permute.xlu0 %1091
      %v1093 = vsel %vm328, %v1062, %v1064
      %v1094 = vsel %vm328, %v1064, %v1066
      %v1095 = vsel %vm328, %v1066, %v1068
      %v1096 = vsel %vm328, %v1070, %v1072
      %v1097 = vsel %vm328, %v1072, %v1074
      %v1098 = vsel %vm328, %v1074, %v1076
      %v1099 = vsel %vm328, %v1078, %v1080
      %v1100 = vsel %vm328, %v1080, %v1082
      %v1101 = vsel %vm328, %v1082, %v1084
      %v1102 = vsel %vm328, %v1086, %v1088
      %v1103 = vsel %vm328, %v1088, %v1090
      %v1104 = vsel %vm328, %v1090, %v1092
      %1117 = vrot.lane.b32.xlu0 %v749, 91
      %v1118 = vpop.permute.xlu0 %1117
      %1119 = vrot.lane.b32.xlu0 %v750, 91
      %v1120 = vpop.permute.xlu0 %1119
      %1121 = vrot.lane.b32.xlu0 %v751, 91
      %v1122 = vpop.permute.xlu0 %1121
      %1123 = vrot.lane.b32.xlu0 %v752, 91
      %v1124 = vpop.permute.xlu0 %1123
      %1125 = vrot.lane.b32.xlu0 %v753, 91
      %v1126 = vpop.permute.xlu0 %1125
      %1127 = vrot.lane.b32.xlu0 %v754, 91
      %v1128 = vpop.permute.xlu0 %1127
      %1129 = vrot.lane.b32.xlu0 %v755, 91
      %v1130 = vpop.permute.xlu0 %1129
      %1131 = vrot.lane.b32.xlu0 %v756, 91
      %v1132 = vpop.permute.xlu0 %1131
      %1133 = vrot.lane.b32.xlu0 %v757, 91
      %v1134 = vpop.permute.xlu0 %1133
      %1135 = vrot.lane.b32.xlu0 %v758, 91
      %v1136 = vpop.permute.xlu0 %1135
      %1137 = vrot.lane.b32.xlu0 %v759, 91
      %v1138 = vpop.permute.xlu0 %1137
      %1139 = vrot.lane.b32.xlu0 %v760, 91
      %v1140 = vpop.permute.xlu0 %1139
      %1141 = vrot.lane.b32.xlu0 %v761, 91
      %v1142 = vpop.permute.xlu0 %1141
      %1143 = vrot.lane.b32.xlu0 %v762, 91
      %v1144 = vpop.permute.xlu0 %1143
      %1145 = vrot.lane.b32.xlu0 %v763, 91
      %v1146 = vpop.permute.xlu0 %1145
      %1147 = vrot.lane.b32.xlu0 %v764, 91
      %v1148 = vpop.permute.xlu0 %1147
      %v1149 = vsel %vm340, %v1118, %v1120
      %v1150 = vsel %vm340, %v1120, %v1122
      %v1151 = vsel %vm340, %v1122, %v1124
      %v1152 = vsel %vm340, %v1126, %v1128
      %v1153 = vsel %vm340, %v1128, %v1130
      %v1154 = vsel %vm340, %v1130, %v1132
      %v1155 = vsel %vm340, %v1134, %v1136
      %v1156 = vsel %vm340, %v1136, %v1138
      %v1157 = vsel %vm340, %v1138, %v1140
      %v1158 = vsel %vm340, %v1142, %v1144
      %v1159 = vsel %vm340, %v1144, %v1146
      %v1160 = vsel %vm340, %v1146, %v1148
      %1173 = vrot.lane.b32.xlu0 %v749, 90
      %v1174 = vpop.permute.xlu0 %1173
      %1175 = vrot.lane.b32.xlu0 %v750, 90
      %v1176 = vpop.permute.xlu0 %1175
      %1177 = vrot.lane.b32.xlu0 %v751, 90
      %v1178 = vpop.permute.xlu0 %1177
      %1179 = vrot.lane.b32.xlu0 %v752, 90
      %v1180 = vpop.permute.xlu0 %1179
      %1181 = vrot.lane.b32.xlu0 %v753, 90
      %v1182 = vpop.permute.xlu0 %1181
      %1183 = vrot.lane.b32.xlu0 %v754, 90
      %v1184 = vpop.permute.xlu0 %1183
      %1185 = vrot.lane.b32.xlu0 %v755, 90
      %v1186 = vpop.permute.xlu0 %1185
      %1187 = vrot.lane.b32.xlu0 %v756, 90
      %v1188 = vpop.permute.xlu0 %1187
      %1189 = vrot.lane.b32.xlu0 %v757, 90
      %v1190 = vpop.permute.xlu0 %1189
      %1191 = vrot.lane.b32.xlu0 %v758, 90
      %v1192 = vpop.permute.xlu0 %1191
      %1193 = vrot.lane.b32.xlu0 %v759, 90
      %v1194 = vpop.permute.xlu0 %1193
      %1195 = vrot.lane.b32.xlu0 %v760, 90
      %v1196 = vpop.permute.xlu0 %1195
      %1197 = vrot.lane.b32.xlu0 %v761, 90
      %v1198 = vpop.permute.xlu0 %1197
      %1199 = vrot.lane.b32.xlu0 %v762, 90
      %v1200 = vpop.permute.xlu0 %1199
      %1201 = vrot.lane.b32.xlu0 %v763, 90
      %v1202 = vpop.permute.xlu0 %1201
      %1203 = vrot.lane.b32.xlu0 %v764, 90
      %v1204 = vpop.permute.xlu0 %1203
      %v1205 = vsel %vm352, %v1174, %v1176
      %v1206 = vsel %vm352, %v1176, %v1178
      %v1207 = vsel %vm352, %v1178, %v1180
      %v1208 = vsel %vm352, %v1182, %v1184
      %v1209 = vsel %vm352, %v1184, %v1186
      %v1210 = vsel %vm352, %v1186, %v1188
      %v1211 = vsel %vm352, %v1190, %v1192
      %v1212 = vsel %vm352, %v1192, %v1194
      %v1213 = vsel %vm352, %v1194, %v1196
      %v1214 = vsel %vm352, %v1198, %v1200
      %v1215 = vsel %vm352, %v1200, %v1202
      %v1216 = vsel %vm352, %v1202, %v1204
      %v1229 = vld [vmem:[%s4] sm:$0xff]
      %v1230 = vld [vmem:[%s4 + $0x8] sm:$0xff]
      %v1231 = vld [vmem:[%s4 + $0x10] sm:$0xff]
      %v1232 = vld [vmem:[%s4 + $0x18] sm:$0xff]
      %v1233 = vld [vmem:[%s4 + $0x20] sm:$0xff]
      %v1234 = vld [vmem:[%s4 + $0x28] sm:$0xff]
      %v1235 = vld [vmem:[%s5] sm:$0xff]
      %v1236 = vld [vmem:[%s5 + $0x8] sm:$0xff]
      %1238 = vset.pattern.permute.xlu0 0
      %1239 = vperm.xlu0 %1238, %v1235
      %v1240 = vpop.permute.xlu0 %1239
      %1243 = vset.pattern.permute.xlu0 0
      %1244 = vperm.xlu0 %1243, %v1236
      %v1245 = vpop.permute.xlu0 %1244
      %vm1247 = vcmask 261120
      %v1249 = vsel %vm1247, %v1231, 0
      %v1252 = vsel %vm1247, %v1234, 0
      %1254 = vmatprep.subr.mxu0 %v750
      %1255 = vmatpush1.msra.mxu0 %v749
      %1256 = vmatprep.subr.mxu0 %v754
      %1257 = vmatpush1.msra.mxu0 %v753
      %1258 = vmatprep.subr.mxu0 %v758
      %1259 = vmatpush1.msra.mxu0 %v757
      %1260 = vmatprep.subr.mxu0 %v762
      %1261 = vmatpush1.msra.mxu0 %v761
      %1262 = vmatprep.subr.mxu0 %v814
      %1263 = vmatpush1.msra.mxu0 %v813
      %1264 = vmatprep.subr.mxu0 %v817
      %1265 = vmatpush1.msra.mxu0 %v816
      %1266 = vmatprep.subr.mxu0 %v820
      %1267 = vmatpush1.msra.mxu0 %v819
      %1268 = vmatprep.subr.mxu0 %v823
      %1269 = vmatpush1.msra.mxu0 %v822
      %1270 = vmatprep.subr.mxu0 %v870
      %1271 = vmatpush1.msra.mxu0 %v869
      %1272 = vmatprep.subr.mxu0 %v873
      %1273 = vmatpush1.msra.mxu0 %v872
      %1274 = vmatprep.subr.mxu0 %v876
      %1275 = vmatpush1.msra.mxu0 %v875
      %1276 = vmatprep.subr.mxu0 %v879
      %1277 = vmatpush1.msra.mxu0 %v878
      %1278 = vmatprep.subr.mxu0 %v926
      %1279 = vmatpush1.msra.mxu0 %v925
      %1280 = vmatprep.subr.mxu0 %v929
      %1281 = vmatpush1.msra.mxu0 %v928
      %1282 = vmatprep.subr.mxu0 %v932
      %1283 = vmatpush1.msra.mxu0 %v931
      %1284 = vmatprep.subr.mxu0 %v935
      %1285 = vmatpush1.msra.mxu0 %v934
      %1286 = vmatprep.subr.mxu0 %v982
      %1287 = vmatpush1.msra.mxu0 %v981
      %1288 = vmatprep.subr.mxu0 %v985
      %1289 = vmatpush1.msra.mxu0 %v984
      %1290 = vmatprep.subr.mxu0 %v988
      %1291 = vmatpush1.msra.mxu0 %v987
      %1292 = vmatprep.subr.mxu0 %v991
      %1293 = vmatpush1.msra.mxu0 %v990
      %1294 = vmatprep.subr.mxu0 %v1038
      %1295 = vmatpush1.msra.mxu0 %v1037
      %1296 = vmatprep.subr.mxu0 %v1041
      %1297 = vmatpush1.msra.mxu0 %v1040
      %1298 = vmatprep.subr.mxu0 %v1044
      %1299 = vmatpush1.msra.mxu0 %v1043
      %1300 = vmatprep.subr.mxu0 %v1047
      %1301 = vmatpush1.msra.mxu0 %v1046
      %1302 = vmatprep.subr.mxu0 %v1094
      %1303 = vmatpush1.msra.mxu0 %v1093
      %1304 = vmatprep.subr.mxu0 %v1097
      %1305 = vmatpush1.msra.mxu0 %v1096
      %1306 = vmatprep.subr.mxu0 %v1100
      %1307 = vmatpush1.msra.mxu0 %v1099
      %1308 = vmatprep.subr.mxu0 %v1103
      %1309 = vmatpush1.msra.mxu0 %v1102
      %1310 = vmatprep.subr.mxu0 %v1150
      %1311 = vmatpush1.msra.mxu0 %v1149
      %1312 = vmatprep.subr.mxu0 %v1153
      %1313 = vmatpush1.msra.mxu0 %v1152
      %1314 = vmatprep.subr.mxu0 %v1156
      %1315 = vmatpush1.msra.mxu0 %v1155
      %1316 = vmatprep.subr.mxu0 %v1159
      %1317 = vmatpush1.msra.mxu0 %v1158
      %1318 = vmatprep.mubr.f32.mxu0 %v1230
      %1319 = vmatmul.mubr.f32.gmra.mrb[0].mxu0 %v1229
      %v1320 = vpop.f32.mrb[0].mxu0
      %v1321 = vadd.f32 %v1240, %v1320
      %v1322 = vpop.f32.mrb[0].mxu0
      %v1323 = vadd.f32 %v1240, %v1322
      %1324 = vmatprep.mubr.f32.mxu0 %v1233
      %1325 = vmatmul.mubr.f32.gmra.mrb[0].mxu0 %v1232
      %v1326 = vpop.f32.mrb[0].mxu0
      %v1327 = vadd.f32 %v1245, %v1326
      %v1328 = vpop.f32.mrb[0].mxu0
      %v1329 = vadd.f32 %v1245, %v1328
      %1330 = vdwg.mxu0
      %1331 = vmatprep.subr.mxu0 %v1206
      %1332 = vmatpush1.msra.mxu0 %v1205
      %1333 = vmatprep.subr.mxu0 %v1209
      %1334 = vmatpush1.msra.mxu0 %v1208
      %1335 = vmatprep.subr.mxu0 %v1212
      %1336 = vmatpush1.msra.mxu0 %v1211
      %1337 = vmatprep.subr.mxu0 %v1215
      %1338 = vmatpush1.msra.mxu0 %v1214
      %1339 = vmatprep.subr.mxu0 0.0
      %1340 = vmatpush1.msra.mxu0 0.0
      %1341 = vmatprep.subr.mxu0 0.0
      %1342 = vmatpush1.msra.mxu0 0.0
      %1343 = vmatprep.subr.mxu0 0.0
      %1344 = vmatpush1.msra.mxu0 0.0
      %1345 = vmatprep.subr.mxu0 0.0
      %1346 = vmatpush1.msra.mxu0 0.0
      %1347 = vmatprep.subr.mxu0 0.0
      %1348 = vmatpush1.msra.mxu0 0.0
      %1349 = vmatprep.subr.mxu0 0.0
      %1350 = vmatpush1.msra.mxu0 0.0
      %1351 = vmatprep.subr.mxu0 0.0
      %1352 = vmatpush1.msra.mxu0 0.0
      %1353 = vmatprep.subr.mxu0 0.0
      %1354 = vmatpush1.msra.mxu0 0.0
      %1355 = vmatprep.subr.mxu0 0.0
      %1356 = vmatpush1.msra.mxu0 0.0
      %1357 = vmatprep.subr.mxu0 0.0
      %1358 = vmatpush1.msra.mxu0 0.0
      %1359 = vmatprep.subr.mxu0 0.0
      %1360 = vmatpush1.msra.mxu0 0.0
      %1361 = vmatprep.subr.mxu0 0.0
      %1362 = vmatpush1.msra.mxu0 0.0
      %1363 = vmatprep.subr.mxu0 0.0
      %1364 = vmatpush1.msra.mxu0 0.0
      %1365 = vmatprep.subr.mxu0 0.0
      %1366 = vmatpush1.msra.mxu0 0.0
      %1367 = vmatprep.subr.mxu0 0.0
      %1368 = vmatpush1.msra.mxu0 0.0
      %1369 = vmatprep.subr.mxu0 0.0
      %1370 = vmatpush1.msra.mxu0 0.0
      %1371 = vmatprep.subr.mxu0 0.0
      %1372 = vmatpush1.msra.mxu0 0.0
      %1373 = vmatprep.subr.mxu0 0.0
      %1374 = vmatpush1.msra.mxu0 0.0
      %1375 = vmatprep.subr.mxu0 0.0
      %1376 = vmatpush1.msra.mxu0 0.0
      %1377 = vmatprep.subr.mxu0 0.0
      %1378 = vmatpush1.msra.mxu0 0.0
      %1379 = vmatprep.subr.mxu0 0.0
      %1380 = vmatpush1.msra.mxu0 0.0
      %1381 = vmatprep.subr.mxu0 0.0
      %1382 = vmatpush1.msra.mxu0 0.0
      %1383 = vmatprep.subr.mxu0 0.0
      %1384 = vmatpush1.msra.mxu0 0.0
      %1385 = vmatprep.subr.mxu0 0.0
      %1386 = vmatpush1.msra.mxu0 0.0
      %1387 = vmatprep.subr.mxu0 0.0
      %1388 = vmatpush1.msra.mxu0 0.0
      %1389 = vmatprep.subr.mxu0 0.0
      %1390 = vmatpush1.msra.mxu0 0.0
      %1391 = vmatprep.subr.mxu0 0.0
      %1392 = vmatpush1.msra.mxu0 0.0
      %1393 = vmatprep.subr.mxu0 0.0
      %1394 = vmatpush1.msra.mxu0 0.0
      %1395 = vmatprep.mubr.f32.mxu0 0.0
      %1396 = vmatmul.mubr.f32.gmra.mrb[0].mxu0 %v1249
      %v1397 = vpop.f32.mrb[0].mxu0
      %v1398 = vadd.f32 %v1321, %v1397
      %v1399 = vpop.f32.mrb[0].mxu0
      %v1400 = vadd.f32 %v1323, %v1399
      %1401 = vmatprep.mubr.f32.mxu0 0.0
      %1402 = vmatmul.mubr.f32.gmra.mrb[0].mxu0 %v1252
      %v1403 = vpop.f32.mrb[0].mxu0
      %v1404 = vadd.f32 %v1327, %v1403
      %v1405 = vpop.f32.mrb[0].mxu0
      %v1406 = vadd.f32 %v1329, %v1405
      %1407 = vdwg.mxu0
      %1408 = vmatprep.subr.mxu0 0.0
      %1409 = vmatpush1.msra.mxu0 %v751
      %1410 = vmatprep.subr.mxu0 0.0
      %1411 = vmatpush1.msra.mxu0 %v755
      %1412 = vmatprep.subr.mxu0 0.0
      %1413 = vmatpush1.msra.mxu0 %v759
      %1414 = vmatprep.subr.mxu0 0.0
      %1415 = vmatpush1.msra.mxu0 %v763
      %1416 = vmatprep.subr.mxu0 0.0
      %1417 = vmatpush1.msra.mxu0 %v815
      %1418 = vmatprep.subr.mxu0 0.0
      %1419 = vmatpush1.msra.mxu0 %v818
      %1420 = vmatprep.subr.mxu0 0.0
      %1421 = vmatpush1.msra.mxu0 %v821
      %1422 = vmatprep.subr.mxu0 0.0
      %1423 = vmatpush1.msra.mxu0 %v824
      %1424 = vmatprep.subr.mxu0 0.0
      %1425 = vmatpush1.msra.mxu0 %v871
      %1426 = vmatprep.subr.mxu0 0.0
      %1427 = vmatpush1.msra.mxu0 %v874
      %1428 = vmatprep.subr.mxu0 0.0
      %1429 = vmatpush1.msra.mxu0 %v877
      %1430 = vmatprep.subr.mxu0 0.0
      %1431 = vmatpush1.msra.mxu0 %v880
      %1432 = vmatprep.subr.mxu0 0.0
      %1433 = vmatpush1.msra.mxu0 %v927
      %1434 = vmatprep.subr.mxu0 0.0
      %1435 = vmatpush1.msra.mxu0 %v930
      %1436 = vmatprep.subr.mxu0 0.0
      %1437 = vmatpush1.msra.mxu0 %v933
      %1438 = vmatprep.subr.mxu0 0.0
      %1439 = vmatpush1.msra.mxu0 %v936
      %1440 = vmatprep.subr.mxu0 0.0
      %1441 = vmatpush1.msra.mxu0 %v983
      %1442 = vmatprep.subr.mxu0 0.0
      %1443 = vmatpush1.msra.mxu0 %v986
      %1444 = vmatprep.subr.mxu0 0.0
      %1445 = vmatpush1.msra.mxu0 %v989
      %1446 = vmatprep.subr.mxu0 0.0
      %1447 = vmatpush1.msra.mxu0 %v992
      %1448 = vmatprep.subr.mxu0 0.0
      %1449 = vmatpush1.msra.mxu0 %v1039
      %1450 = vmatprep.subr.mxu0 0.0
      %1451 = vmatpush1.msra.mxu0 %v1042
      %1452 = vmatprep.subr.mxu0 0.0
      %1453 = vmatpush1.msra.mxu0 %v1045
      %1454 = vmatprep.subr.mxu0 0.0
      %1455 = vmatpush1.msra.mxu0 %v1048
      %1456 = vmatprep.subr.mxu0 0.0
      %1457 = vmatpush1.msra.mxu0 %v1095
      %1458 = vmatprep.subr.mxu0 0.0
      %1459 = vmatpush1.msra.mxu0 %v1098
      %1460 = vmatprep.subr.mxu0 0.0
      %1461 = vmatpush1.msra.mxu0 %v1101
      %1462 = vmatprep.subr.mxu0 0.0
      %1463 = vmatpush1.msra.mxu0 %v1104
      %1464 = vmatprep.subr.mxu0 0.0
      %1465 = vmatpush1.msra.mxu0 %v1151
      %1466 = vmatprep.subr.mxu0 0.0
      %1467 = vmatpush1.msra.mxu0 %v1154
      %1468 = vmatprep.subr.mxu0 0.0
      %1469 = vmatpush1.msra.mxu0 %v1157
      %1470 = vmatprep.subr.mxu0 0.0
      %1471 = vmatpush1.msra.mxu0 %v1160
      %1472 = vmatprep.mubr.f32.mxu0 %v1230
      %1473 = vmatmul.mubr.f32.gmra.mrb[0].mxu0 %v1229
      %v1474 = vpop.f32.mrb[0].mxu0
      %v1475 = vadd.f32 %v1240, %v1474
      %v1476 = vpop.f32.mrb[0].mxu0
      %1477 = vmatprep.mubr.f32.mxu0 %v1233
      %1478 = vmatmul.mubr.f32.gmra.mrb[0].mxu0 %v1232
      %v1479 = vpop.f32.mrb[0].mxu0
      %v1480 = vadd.f32 %v1245, %v1479
      %v1481 = vpop.f32.mrb[0].mxu0
      %1482 = vdwg.mxu0
      %1483 = vmatprep.subr.mxu0 0.0
      %1484 = vmatpush1.msra.mxu0 %v1207
      %1485 = vmatprep.subr.mxu0 0.0
      %1486 = vmatpush1.msra.mxu0 %v1210
      %1487 = vmatprep.subr.mxu0 0.0
      %1488 = vmatpush1.msra.mxu0 %v1213
      %1489 = vmatprep.subr.mxu0 0.0
      %1490 = vmatpush1.msra.mxu0 %v1216
      %1491 = vmatprep.subr.mxu0 0.0
      %1492 = vmatpush1.msra.mxu0 0.0
      %1493 = vmatprep.subr.mxu0 0.0
      %1494 = vmatpush1.msra.mxu0 0.0
      %1495 = vmatprep.subr.mxu0 0.0
      %1496 = vmatpush1.msra.mxu0 0.0
      %1497 = vmatprep.subr.mxu0 0.0
      %1498 = vmatpush1.msra.mxu0 0.0
      %1499 = vmatprep.subr.mxu0 0.0
      %1500 = vmatpush1.msra.mxu0 0.0
      %1501 = vmatprep.subr.mxu0 0.0
      %1502 = vmatpush1.msra.mxu0 0.0
      %1503 = vmatprep.subr.mxu0 0.0
      %1504 = vmatpush1.msra.mxu0 0.0
      %1505 = vmatprep.subr.mxu0 0.0
      %1506 = vmatpush1.msra.mxu0 0.0
      %1507 = vmatprep.subr.mxu0 0.0
      %1508 = vmatpush1.msra.mxu0 0.0
      %1509 = vmatprep.subr.mxu0 0.0
      %1510 = vmatpush1.msra.mxu0 0.0
      %1511 = vmatprep.subr.mxu0 0.0
      %1512 = vmatpush1.msra.mxu0 0.0
      %1513 = vmatprep.subr.mxu0 0.0
      %1514 = vmatpush1.msra.mxu0 0.0
      %1515 = vmatprep.subr.mxu0 0.0
      %1516 = vmatpush1.msra.mxu0 0.0
      %1517 = vmatprep.subr.mxu0 0.0
      %1518 = vmatpush1.msra.mxu0 0.0
      %1519 = vmatprep.subr.mxu0 0.0
      %1520 = vmatpush1.msra.mxu0 0.0
      %1521 = vmatprep.subr.mxu0 0.0
      %1522 = vmatpush1.msra.mxu0 0.0
      %1523 = vmatprep.subr.mxu0 0.0
      %1524 = vmatpush1.msra.mxu0 0.0
      %1525 = vmatprep.subr.mxu0 0.0
      %1526 = vmatpush1.msra.mxu0 0.0
      %1527 = vmatprep.subr.mxu0 0.0
      %1528 = vmatpush1.msra.mxu0 0.0
      %1529 = vmatprep.subr.mxu0 0.0
      %1530 = vmatpush1.msra.mxu0 0.0
      %1531 = vmatprep.subr.mxu0 0.0
      %1532 = vmatpush1.msra.mxu0 0.0
      %1533 = vmatprep.subr.mxu0 0.0
      %1534 = vmatpush1.msra.mxu0 0.0
      %1535 = vmatprep.subr.mxu0 0.0
      %1536 = vmatpush1.msra.mxu0 0.0
      %1537 = vmatprep.subr.mxu0 0.0
      %1538 = vmatpush1.msra.mxu0 0.0
      %1539 = vmatprep.subr.mxu0 0.0
      %1540 = vmatpush1.msra.mxu0 0.0
      %1541 = vmatprep.subr.mxu0 0.0
      %1542 = vmatpush1.msra.mxu0 0.0
      %1543 = vmatprep.subr.mxu0 0.0
      %1544 = vmatpush1.msra.mxu0 0.0
      %1545 = vmatprep.subr.mxu0 0.0
      %1546 = vmatpush1.msra.mxu0 0.0
      %1547 = vmatprep.mubr.f32.mxu0 0.0
      %1548 = vmatmul.mubr.f32.gmra.mrb[0].mxu0 %v1249
      %v1549 = vpop.f32.mrb[0].mxu0
      %v1550 = vadd.f32 %v1475, %v1549
      %v1551 = vpop.f32.mrb[0].mxu0
      %1552 = vmatprep.mubr.f32.mxu0 0.0
      %1553 = vmatmul.mubr.f32.gmra.mrb[0].mxu0 %v1252
      %v1554 = vpop.f32.mrb[0].mxu0
      %v1555 = vadd.f32 %v1480, %v1554
      %v1556 = vpop.f32.mrb[0].mxu0
      %1557 = vdwg.mxu0
      %1558 = vst [vmem:[%s251] sm:$0xff] %v1398
      %1559 = vst [vmem:[%s251 + $0x8] sm:$0xff] %v1400
      %1560 = vst [vmem:[%s251 + $0x10] sm:$0xff] %v1550
      %1561 = vst [vmem:[%s251 + $0x18] sm:$0xff] %v1404
      %1562 = vst [vmem:[%s251 + $0x20] sm:$0xff] %v1406
      %1563 = vst [vmem:[%s251 + $0x28] sm:$0xff] %v1555
      %p1564 = scmp.lt.s32.totalorder %s17, 1
      %s1565 = scalar_select %p1564, %s17, 1
      %s1566 = smul.addr %s1565, 6
      %s1567 = smul.addr %s1566, 8
      %s1568 = scalar_lea.vmem %s6, %s1567
      // Predicated region
      $region45: #{super_resolution_forward.1} parent=43 // pred_check
        %p1569 = pneg %p166
      $region46: #{super_resolution_forward.1} parent=43 // pred_check_branch
        %1571 = sbr.rel (%p1569) target = $region48
      $region47: #{super_resolution_forward.1} parent=43 // pred_region
        _
      $region48: #{super_resolution_forward.1} parent=43 // pred_fallthru
        _
    $region44: #{super_resolution_forward.1} parent=5 // pred_fallthru
      _
    %p1572 = scmp.le.s32.totalorder 2, %s12
    // Predicated region
    $region49: #{super_resolution_forward.1} parent=5 // pred_check
      %p1573 = pneg %p1572
    $region50: #{super_resolution_forward.1} parent=5 // pred_check_branch
      %1575 = sbr.rel (%p1573) target = $region52
    $region51: #{super_resolution_forward.1} parent=5 // pred_region
      %s1576 = ssub.s32 %s12, 2
      // Predicated region
      $region53: #{super_resolution_forward.1} parent=51 // pred_check
        %p1577 = pneg %p172
      $region54: #{super_resolution_forward.1} parent=51 // pred_check_branch
        %1579 = sbr.rel (%p1577) target = $region56
      $region55: #{super_resolution_forward.1} parent=51 // pred_region
        %p1580 = scmp.lt.s32.totalorder %s18, 1
        %s1581 = scalar_select %p1580, %s18, 1
        %s1582 = smul.addr %s1581, 6
        %s1583 = smul.addr %s1582, 8
        %s1584 = scalar_lea.vmem %s6, %s1583
      $region56: #{super_resolution_forward.1} parent=51 // pred_fallthru
        _
    $region52: #{super_resolution_forward.1} parent=5 // pred_fallthru
      _
  $region6: #{super_resolution_forward.1} parent=0 // loop_footer
    %s16 = sadd.s32 1, %s12
  $region7: #{super_resolution_forward.1} parent=0 // loop_footer_branch
    %11 = sbr.rel target = $region3
  $region8: #{super_resolution_forward.1} parent=0 // loop_exit
    _

</llo_original>
